<compile_context>
chip_gen: v7x
topology: tpu7x:2x2x1
jax: 0.10.0
libtpu: 0.0.40
codegen_flags: <defaults>
</compile_context>

<pallas_src>
import numpy as np
import jax
import jax.numpy as jnp
from jax.experimental import pallas as pl
from jax.experimental.pallas import tpu as pltpu

HIDDEN_SIZE = 32     # LSTM input size (module-level hidden_size)
OUTPUT_SIZE = 32     # LSTM hidden/output size
NUM_LAYERS = 2
BATCH = 2
SEQ = 8


def lstm_kernel(x_ref, wih_ref, whh_ref, b_ref, out_ref):
    """Whole 2-layer LSTM in one invocation (no grid).

    x_ref  : (T*B, Hin)   time-major, flattened (row = t*B + b)
    wih_ref: (L, Hin, 4H) transposed torch weight_ih, stacked over layers
    whh_ref: (L, H, 4H)   transposed torch weight_hh, stacked over layers
    b_ref  : (L, 1, 4H)   b_ih + b_hh
    out_ref: (T*B, H)     last-layer hidden states, time-major flattened
    """
    H = OUTPUT_SIZE
    B = BATCH
    T = SEQ

    seq = x_ref[...]                                     # (T*B, Hin), in vregs

    for layer in range(NUM_LAYERS):
        # Hoisted input projection + bias: one MXU push per layer.
        gates_x = jnp.dot(seq, wih_ref[layer],
                          preferred_element_type=jnp.float32) + b_ref[layer]
        whh = whh_ref[layer]                             # (H, 4H), loaded once

        h = jnp.zeros((B, H), jnp.float32)               # h0 = 0
        c = jnp.zeros((B, H), jnp.float32)               # c0 = 0
        hs = []
        for t in range(T):                               # fully unrolled, state in vregs
            gates = gates_x[t * B:(t + 1) * B, :] + jnp.dot(
                h, whh, preferred_element_type=jnp.float32)       # (B, 4H)
            i = jax.nn.sigmoid(gates[:, 0 * H:1 * H])
            f = jax.nn.sigmoid(gates[:, 1 * H:2 * H])
            g = jnp.tanh(gates[:, 2 * H:3 * H])
            o = jax.nn.sigmoid(gates[:, 3 * H:4 * H])
            c = f * c + i * g
            h = o * jnp.tanh(c)
            hs.append(h)

        # Inter-layer dropout (p=0.2) is training-only -> no-op in this
        # eval-mode forward.
        seq = jnp.concatenate(hs, axis=0)                # (T*B, H) feeds layer+1

    # Single final store (writes are outside the recurrence critical path).
    out_ref[...] = seq.astype(out_ref.dtype)


def decoder_rnn_forward(x, params):
    """x: (B, T, HIDDEN_SIZE) float32 -> (B, T, OUTPUT_SIZE) float32."""
    wih, whh, b = params
    B, T, Hin = x.shape
    H = OUTPUT_SIZE

    # Time-major, flattened to (T*B, Hin) so the hoisted projection is one
    # dense 2-D matmul and the kernel works purely on 2-D tiles.
    x_flat = jnp.transpose(x, (1, 0, 2)).reshape(T * B, Hin)

    vmem = lambda: pl.BlockSpec(memory_space=pltpu.MemorySpace.VMEM)
    out_flat = pl.pallas_call(
        lstm_kernel,
        out_shape=jax.ShapeDtypeStruct((T * B, H), jnp.float32),
        in_specs=[vmem(), vmem(), vmem(), vmem()],
        out_specs=vmem(),
    )(x_flat, wih, whh, b)

    return jnp.transpose(out_flat.reshape(T, B, H), (1, 0, 2))   # (B, T, H)


def init_params(key):
    """Deterministic synthetic params mirroring the module's __init__ shapes.
    Layer-0 weight_ih/weight_hh: orthogonal with gain sqrt(2) (as in module).
    Everything else: PyTorch default uniform(-1/sqrt(H), 1/sqrt(H))."""
    H = OUTPUT_SIZE
    keys = jax.random.split(key, 6)
    ortho = jax.nn.initializers.orthogonal(scale=float(np.sqrt(2.0)))
    k = 1.0 / float(np.sqrt(H))

    wih_l0 = ortho(keys[0], (4 * H, HIDDEN_SIZE))                    # torch layout
    whh_l0 = ortho(keys[1], (4 * H, H))
    wih_l1 = jax.random.uniform(keys[2], (4 * H, H), minval=-k, maxval=k)
    whh_l1 = jax.random.uniform(keys[3], (4 * H, H), minval=-k, maxval=k)
    b_ih = jax.random.uniform(keys[4], (NUM_LAYERS, 4 * H), minval=-k, maxval=k)
    b_hh = jax.random.uniform(keys[5], (NUM_LAYERS, 4 * H), minval=-k, maxval=k)

    wih = jnp.stack([wih_l0.T, wih_l1.T]).astype(jnp.float32)            # (L, Hin, 4H)
    whh = jnp.stack([whh_l0.T, whh_l1.T]).astype(jnp.float32)            # (L, H, 4H)
    b = (b_ih + b_hh).reshape(NUM_LAYERS, 1, 4 * H).astype(jnp.float32)  # (L, 1, 4H)
    return wih, whh, b


def lstm_reference(x, params):
    """Pure-JAX reference for the same 2-layer LSTM (eval-mode)."""
    wih, whh, b = params
    B, T, _ = x.shape
    H = OUTPUT_SIZE
    seq = x
    for layer in range(NUM_LAYERS):
        Wih, Whh, bias = wih[layer], whh[layer], b[layer]

        def step(carry, xt, Wih=Wih, Whh=Whh, bias=bias):
            h, c = carry
            gates = xt @ Wih + h @ Whh + bias
            i = jax.nn.sigmoid(gates[:, 0 * H:1 * H])
            f = jax.nn.sigmoid(gates[:, 1 * H:2 * H])
            g = jnp.tanh(gates[:, 2 * H:3 * H])
            o = jax.nn.sigmoid(gates[:, 3 * H:4 * H])
            c = f * c + i * g
            h = o * jnp.tanh(c)
            return (h, c), h

        init = (jnp.zeros((B, H), jnp.float32), jnp.zeros((B, H), jnp.float32))
        _, ys = jax.lax.scan(step, init, jnp.swapaxes(seq, 0, 1))
        seq = jnp.swapaxes(ys, 0, 1)
    return seq


if __name__ == "__main__":
    key = jax.random.PRNGKey(0)
    k_x, k_p = jax.random.split(key)
    x = jax.random.normal(k_x, (BATCH, SEQ, HIDDEN_SIZE), dtype=jnp.float32)
    params = init_params(k_p)

    out = jax.block_until_ready(decoder_rnn_forward(x, params))
    ref = jax.block_until_ready(lstm_reference(x, params))

    assert out.shape == (BATCH, SEQ, OUTPUT_SIZE)
    assert np.allclose(np.asarray(out), np.asarray(ref), atol=1e-5, rtol=1e-5)

    print("KERNEL_OK")
</pallas_src>

<mosaic_0001>
module attributes {stable_mosaic.version = 11 : i64} {
  func.func @lstm_kernel(%arg0: memref<16x32xf32, #tpu.memory_space<vmem>>, %arg1: memref<2x32x128xf32, #tpu.memory_space<vmem>>, %arg2: memref<2x32x128xf32, #tpu.memory_space<vmem>>, %arg3: memref<2x1x128xf32, #tpu.memory_space<vmem>>, %arg4: memref<16x32xf32, #tpu.memory_space<vmem>>) attributes {dimension_semantics = [], scalar_prefetch = 0 : i64, scratch_operands = 0 : i64, tpu.core_type = #tpu.core_type<tc>} {
    %c0 = arith.constant 0 : index
    %c0_0 = arith.constant 0 : index
    %0 = vector.load %arg0[%c0, %c0_0] : memref<16x32xf32, #tpu.memory_space<vmem>>, vector<16x32xf32>
    %c0_1 = arith.constant 0 : index
    %c0_2 = arith.constant 0 : index
    %c0_3 = arith.constant 0 : index
    %1 = vector.load %arg1[%c0_1, %c0_2, %c0_3] : memref<2x32x128xf32, #tpu.memory_space<vmem>>, vector<1x32x128xf32>
    %2 = vector.shape_cast %1 : vector<1x32x128xf32> to vector<32x128xf32>
    %cst = arith.constant dense<0.000000e+00> : vector<16x128xf32>
    %3 = tpu.matmul %0, %2, %cst {dimension_numbers = #tpu.dot_dimension_numbers<[1], [0], [0], [1], [0, 0, 1, 1], [], []>} : vector<16x32xf32>, vector<32x128xf32>, vector<16x128xf32> -> vector<16x128xf32>
    %c0_4 = arith.constant 0 : index
    %c0_5 = arith.constant 0 : index
    %c0_6 = arith.constant 0 : index
    %4 = vector.load %arg3[%c0_4, %c0_5, %c0_6] : memref<2x1x128xf32, #tpu.memory_space<vmem>>, vector<1x1x128xf32>
    %5 = vector.shape_cast %4 : vector<1x1x128xf32> to vector<1x128xf32>
    %6 = vector.broadcast %5 : vector<1x128xf32> to vector<16x128xf32>
    %7 = arith.addf %3, %6 : vector<16x128xf32>
    %c0_7 = arith.constant 0 : index
    %c0_8 = arith.constant 0 : index
    %c0_9 = arith.constant 0 : index
    %8 = vector.load %arg2[%c0_7, %c0_8, %c0_9] : memref<2x32x128xf32, #tpu.memory_space<vmem>>, vector<1x32x128xf32>
    %9 = vector.shape_cast %8 : vector<1x32x128xf32> to vector<32x128xf32>
    %cst_10 = arith.constant 0.000000e+00 : f32
    %10 = vector.broadcast %cst_10 : f32 to vector<2x32xf32>
    %cst_11 = arith.constant 0.000000e+00 : f32
    %11 = vector.broadcast %cst_11 : f32 to vector<2x32xf32>
    %12 = vector.extract_strided_slice %7 {offsets = [0, 0], sizes = [2, 128], strides = [1, 1]} : vector<16x128xf32> to vector<2x128xf32>
    %cst_12 = arith.constant dense<0.000000e+00> : vector<2x128xf32>
    %13 = tpu.matmul %10, %9, %cst_12 {dimension_numbers = #tpu.dot_dimension_numbers<[1], [0], [0], [1], [0, 0, 1, 1], [], []>} : vector<2x32xf32>, vector<32x128xf32>, vector<2x128xf32> -> vector<2x128xf32>
    %14 = arith.addf %12, %13 : vector<2x128xf32>
    %15 = vector.extract_strided_slice %14 {offsets = [0, 0], sizes = [2, 32], strides = [1, 1]} : vector<2x128xf32> to vector<2x32xf32>
    %16 = arith.negf %15 : vector<2x32xf32>
    %17 = math.exp %16 : vector<2x32xf32>
    %cst_13 = arith.constant 1.000000e+00 : f32
    %18 = vector.broadcast %cst_13 : f32 to vector<2x32xf32>
    %19 = arith.addf %18, %17 : vector<2x32xf32>
    %20 = arith.divf %18, %19 : vector<2x32xf32>
    %21 = vector.extract_strided_slice %14 {offsets = [0, 32], sizes = [2, 32], strides = [1, 1]} : vector<2x128xf32> to vector<2x32xf32>
    %22 = arith.negf %21 : vector<2x32xf32>
    %23 = math.exp %22 : vector<2x32xf32>
    %cst_14 = arith.constant 1.000000e+00 : f32
    %24 = vector.broadcast %cst_14 : f32 to vector<2x32xf32>
    %25 = arith.addf %24, %23 : vector<2x32xf32>
    %26 = arith.divf %24, %25 : vector<2x32xf32>
    %27 = vector.extract_strided_slice %14 {offsets = [0, 64], sizes = [2, 32], strides = [1, 1]} : vector<2x128xf32> to vector<2x32xf32>
    %28 = math.tanh %27 : vector<2x32xf32>
    %29 = vector.extract_strided_slice %14 {offsets = [0, 96], sizes = [2, 32], strides = [1, 1]} : vector<2x128xf32> to vector<2x32xf32>
    %30 = arith.negf %29 : vector<2x32xf32>
    %31 = math.exp %30 : vector<2x32xf32>
    %cst_15 = arith.constant 1.000000e+00 : f32
    %32 = vector.broadcast %cst_15 : f32 to vector<2x32xf32>
    %33 = arith.addf %32, %31 : vector<2x32xf32>
    %34 = arith.divf %32, %33 : vector<2x32xf32>
    %35 = arith.mulf %26, %11 : vector<2x32xf32>
    %36 = arith.mulf %20, %28 : vector<2x32xf32>
    %37 = arith.addf %35, %36 : vector<2x32xf32>
    %38 = math.tanh %37 : vector<2x32xf32>
    %39 = arith.mulf %34, %38 : vector<2x32xf32>
    %40 = vector.extract_strided_slice %7 {offsets = [2, 0], sizes = [2, 128], strides = [1, 1]} : vector<16x128xf32> to vector<2x128xf32>
    %cst_16 = arith.constant dense<0.000000e+00> : vector<2x128xf32>
    %41 = tpu.matmul %39, %9, %cst_16 {dimension_numbers = #tpu.dot_dimension_numbers<[1], [0], [0], [1], [0, 0, 1, 1], [], []>} : vector<2x32xf32>, vector<32x128xf32>, vector<2x128xf32> -> vector<2x128xf32>
    %42 = arith.addf %40, %41 : vector<2x128xf32>
    %43 = vector.extract_strided_slice %42 {offsets = [0, 0], sizes = [2, 32], strides = [1, 1]} : vector<2x128xf32> to vector<2x32xf32>
    %44 = arith.negf %43 : vector<2x32xf32>
    %45 = math.exp %44 : vector<2x32xf32>
    %cst_17 = arith.constant 1.000000e+00 : f32
    %46 = vector.broadcast %cst_17 : f32 to vector<2x32xf32>
    %47 = arith.addf %46, %45 : vector<2x32xf32>
    %48 = arith.divf %46, %47 : vector<2x32xf32>
    %49 = vector.extract_strided_slice %42 {offsets = [0, 32], sizes = [2, 32], strides = [1, 1]} : vector<2x128xf32> to vector<2x32xf32>
    %50 = arith.negf %49 : vector<2x32xf32>
    %51 = math.exp %50 : vector<2x32xf32>
    %cst_18 = arith.constant 1.000000e+00 : f32
    %52 = vector.broadcast %cst_18 : f32 to vector<2x32xf32>
    %53 = arith.addf %52, %51 : vector<2x32xf32>
    %54 = arith.divf %52, %53 : vector<2x32xf32>
    %55 = vector.extract_strided_slice %42 {offsets = [0, 64], sizes = [2, 32], strides = [1, 1]} : vector<2x128xf32> to vector<2x32xf32>
    %56 = math.tanh %55 : vector<2x32xf32>
    %57 = vector.extract_strided_slice %42 {offsets = [0, 96], sizes = [2, 32], strides = [1, 1]} : vector<2x128xf32> to vector<2x32xf32>
    %58 = arith.negf %57 : vector<2x32xf32>
    %59 = math.exp %58 : vector<2x32xf32>
    %cst_19 = arith.constant 1.000000e+00 : f32
    %60 = vector.broadcast %cst_19 : f32 to vector<2x32xf32>
    %61 = arith.addf %60, %59 : vector<2x32xf32>
    %62 = arith.divf %60, %61 : vector<2x32xf32>
    %63 = arith.mulf %54, %37 : vector<2x32xf32>
    %64 = arith.mulf %48, %56 : vector<2x32xf32>
    %65 = arith.addf %63, %64 : vector<2x32xf32>
    %66 = math.tanh %65 : vector<2x32xf32>
    %67 = arith.mulf %62, %66 : vector<2x32xf32>
    %68 = vector.extract_strided_slice %7 {offsets = [4, 0], sizes = [2, 128], strides = [1, 1]} : vector<16x128xf32> to vector<2x128xf32>
    %cst_20 = arith.constant dense<0.000000e+00> : vector<2x128xf32>
    %69 = tpu.matmul %67, %9, %cst_20 {dimension_numbers = #tpu.dot_dimension_numbers<[1], [0], [0], [1], [0, 0, 1, 1], [], []>} : vector<2x32xf32>, vector<32x128xf32>, vector<2x128xf32> -> vector<2x128xf32>
    %70 = arith.addf %68, %69 : vector<2x128xf32>
    %71 = vector.extract_strided_slice %70 {offsets = [0, 0], sizes = [2, 32], strides = [1, 1]} : vector<2x128xf32> to vector<2x32xf32>
    %72 = arith.negf %71 : vector<2x32xf32>
    %73 = math.exp %72 : vector<2x32xf32>
    %cst_21 = arith.constant 1.000000e+00 : f32
    %74 = vector.broadcast %cst_21 : f32 to vector<2x32xf32>
    %75 = arith.addf %74, %73 : vector<2x32xf32>
    %76 = arith.divf %74, %75 : vector<2x32xf32>
    %77 = vector.extract_strided_slice %70 {offsets = [0, 32], sizes = [2, 32], strides = [1, 1]} : vector<2x128xf32> to vector<2x32xf32>
    %78 = arith.negf %77 : vector<2x32xf32>
    %79 = math.exp %78 : vector<2x32xf32>
    %cst_22 = arith.constant 1.000000e+00 : f32
    %80 = vector.broadcast %cst_22 : f32 to vector<2x32xf32>
    %81 = arith.addf %80, %79 : vector<2x32xf32>
    %82 = arith.divf %80, %81 : vector<2x32xf32>
    %83 = vector.extract_strided_slice %70 {offsets = [0, 64], sizes = [2, 32], strides = [1, 1]} : vector<2x128xf32> to vector<2x32xf32>
    %84 = math.tanh %83 : vector<2x32xf32>
    %85 = vector.extract_strided_slice %70 {offsets = [0, 96], sizes = [2, 32], strides = [1, 1]} : vector<2x128xf32> to vector<2x32xf32>
    %86 = arith.negf %85 : vector<2x32xf32>
    %87 = math.exp %86 : vector<2x32xf32>
    %cst_23 = arith.constant 1.000000e+00 : f32
    %88 = vector.broadcast %cst_23 : f32 to vector<2x32xf32>
    %89 = arith.addf %88, %87 : vector<2x32xf32>
    %90 = arith.divf %88, %89 : vector<2x32xf32>
    %91 = arith.mulf %82, %65 : vector<2x32xf32>
    %92 = arith.mulf %76, %84 : vector<2x32xf32>
    %93 = arith.addf %91, %92 : vector<2x32xf32>
    %94 = math.tanh %93 : vector<2x32xf32>
    %95 = arith.mulf %90, %94 : vector<2x32xf32>
    %96 = vector.extract_strided_slice %7 {offsets = [6, 0], sizes = [2, 128], strides = [1, 1]} : vector<16x128xf32> to vector<2x128xf32>
    %cst_24 = arith.constant dense<0.000000e+00> : vector<2x128xf32>
    %97 = tpu.matmul %95, %9, %cst_24 {dimension_numbers = #tpu.dot_dimension_numbers<[1], [0], [0], [1], [0, 0, 1, 1], [], []>} : vector<2x32xf32>, vector<32x128xf32>, vector<2x128xf32> -> vector<2x128xf32>
    %98 = arith.addf %96, %97 : vector<2x128xf32>
    %99 = vector.extract_strided_slice %98 {offsets = [0, 0], sizes = [2, 32], strides = [1, 1]} : vector<2x128xf32> to vector<2x32xf32>
    %100 = arith.negf %99 : vector<2x32xf32>
    %101 = math.exp %100 : vector<2x32xf32>
    %cst_25 = arith.constant 1.000000e+00 : f32
    %102 = vector.broadcast %cst_25 : f32 to vector<2x32xf32>
    %103 = arith.addf %102, %101 : vector<2x32xf32>
    %104 = arith.divf %102, %103 : vector<2x32xf32>
    %105 = vector.extract_strided_slice %98 {offsets = [0, 32], sizes = [2, 32], strides = [1, 1]} : vector<2x128xf32> to vector<2x32xf32>
    %106 = arith.negf %105 : vector<2x32xf32>
    %107 = math.exp %106 : vector<2x32xf32>
    %cst_26 = arith.constant 1.000000e+00 : f32
    %108 = vector.broadcast %cst_26 : f32 to vector<2x32xf32>
    %109 = arith.addf %108, %107 : vector<2x32xf32>
    %110 = arith.divf %108, %109 : vector<2x32xf32>
    %111 = vector.extract_strided_slice %98 {offsets = [0, 64], sizes = [2, 32], strides = [1, 1]} : vector<2x128xf32> to vector<2x32xf32>
    %112 = math.tanh %111 : vector<2x32xf32>
    %113 = vector.extract_strided_slice %98 {offsets = [0, 96], sizes = [2, 32], strides = [1, 1]} : vector<2x128xf32> to vector<2x32xf32>
    %114 = arith.negf %113 : vector<2x32xf32>
    %115 = math.exp %114 : vector<2x32xf32>
    %cst_27 = arith.constant 1.000000e+00 : f32
    %116 = vector.broadcast %cst_27 : f32 to vector<2x32xf32>
    %117 = arith.addf %116, %115 : vector<2x32xf32>
    %118 = arith.divf %116, %117 : vector<2x32xf32>
    %119 = arith.mulf %110, %93 : vector<2x32xf32>
    %120 = arith.mulf %104, %112 : vector<2x32xf32>
    %121 = arith.addf %119, %120 : vector<2x32xf32>
    %122 = math.tanh %121 : vector<2x32xf32>
    %123 = arith.mulf %118, %122 : vector<2x32xf32>
    %124 = vector.extract_strided_slice %7 {offsets = [8, 0], sizes = [2, 128], strides = [1, 1]} : vector<16x128xf32> to vector<2x128xf32>
    %cst_28 = arith.constant dense<0.000000e+00> : vector<2x128xf32>
    %125 = tpu.matmul %123, %9, %cst_28 {dimension_numbers = #tpu.dot_dimension_numbers<[1], [0], [0], [1], [0, 0, 1, 1], [], []>} : vector<2x32xf32>, vector<32x128xf32>, vector<2x128xf32> -> vector<2x128xf32>
    %126 = arith.addf %124, %125 : vector<2x128xf32>
    %127 = vector.extract_strided_slice %126 {offsets = [0, 0], sizes = [2, 32], strides = [1, 1]} : vector<2x128xf32> to vector<2x32xf32>
    %128 = arith.negf %127 : vector<2x32xf32>
    %129 = math.exp %128 : vector<2x32xf32>
    %cst_29 = arith.constant 1.000000e+00 : f32
    %130 = vector.broadcast %cst_29 : f32 to vector<2x32xf32>
    %131 = arith.addf %130, %129 : vector<2x32xf32>
    %132 = arith.divf %130, %131 : vector<2x32xf32>
    %133 = vector.extract_strided_slice %126 {offsets = [0, 32], sizes = [2, 32], strides = [1, 1]} : vector<2x128xf32> to vector<2x32xf32>
    %134 = arith.negf %133 : vector<2x32xf32>
    %135 = math.exp %134 : vector<2x32xf32>
    %cst_30 = arith.constant 1.000000e+00 : f32
    %136 = vector.broadcast %cst_30 : f32 to vector<2x32xf32>
    %137 = arith.addf %136, %135 : vector<2x32xf32>
    %138 = arith.divf %136, %137 : vector<2x32xf32>
    %139 = vector.extract_strided_slice %126 {offsets = [0, 64], sizes = [2, 32], strides = [1, 1]} : vector<2x128xf32> to vector<2x32xf32>
    %140 = math.tanh %139 : vector<2x32xf32>
    %141 = vector.extract_strided_slice %126 {offsets = [0, 96], sizes = [2, 32], strides = [1, 1]} : vector<2x128xf32> to vector<2x32xf32>
    %142 = arith.negf %141 : vector<2x32xf32>
    %143 = math.exp %142 : vector<2x32xf32>
    %cst_31 = arith.constant 1.000000e+00 : f32
    %144 = vector.broadcast %cst_31 : f32 to vector<2x32xf32>
    %145 = arith.addf %144, %143 : vector<2x32xf32>
    %146 = arith.divf %144, %145 : vector<2x32xf32>
    %147 = arith.mulf %138, %121 : vector<2x32xf32>
    %148 = arith.mulf %132, %140 : vector<2x32xf32>
    %149 = arith.addf %147, %148 : vector<2x32xf32>
    %150 = math.tanh %149 : vector<2x32xf32>
    %151 = arith.mulf %146, %150 : vector<2x32xf32>
    %152 = vector.extract_strided_slice %7 {offsets = [10, 0], sizes = [2, 128], strides = [1, 1]} : vector<16x128xf32> to vector<2x128xf32>
    %cst_32 = arith.constant dense<0.000000e+00> : vector<2x128xf32>
    %153 = tpu.matmul %151, %9, %cst_32 {dimension_numbers = #tpu.dot_dimension_numbers<[1], [0], [0], [1], [0, 0, 1, 1], [], []>} : vector<2x32xf32>, vector<32x128xf32>, vector<2x128xf32> -> vector<2x128xf32>
    %154 = arith.addf %152, %153 : vector<2x128xf32>
    %155 = vector.extract_strided_slice %154 {offsets = [0, 0], sizes = [2, 32], strides = [1, 1]} : vector<2x128xf32> to vector<2x32xf32>
    %156 = arith.negf %155 : vector<2x32xf32>
    %157 = math.exp %156 : vector<2x32xf32>
    %cst_33 = arith.constant 1.000000e+00 : f32
    %158 = vector.broadcast %cst_33 : f32 to vector<2x32xf32>
    %159 = arith.addf %158, %157 : vector<2x32xf32>
    %160 = arith.divf %158, %159 : vector<2x32xf32>
    %161 = vector.extract_strided_slice %154 {offsets = [0, 32], sizes = [2, 32], strides = [1, 1]} : vector<2x128xf32> to vector<2x32xf32>
    %162 = arith.negf %161 : vector<2x32xf32>
    %163 = math.exp %162 : vector<2x32xf32>
    %cst_34 = arith.constant 1.000000e+00 : f32
    %164 = vector.broadcast %cst_34 : f32 to vector<2x32xf32>
    %165 = arith.addf %164, %163 : vector<2x32xf32>
    %166 = arith.divf %164, %165 : vector<2x32xf32>
    %167 = vector.extract_strided_slice %154 {offsets = [0, 64], sizes = [2, 32], strides = [1, 1]} : vector<2x128xf32> to vector<2x32xf32>
    %168 = math.tanh %167 : vector<2x32xf32>
    %169 = vector.extract_strided_slice %154 {offsets = [0, 96], sizes = [2, 32], strides = [1, 1]} : vector<2x128xf32> to vector<2x32xf32>
    %170 = arith.negf %169 : vector<2x32xf32>
    %171 = math.exp %170 : vector<2x32xf32>
    %cst_35 = arith.constant 1.000000e+00 : f32
    %172 = vector.broadcast %cst_35 : f32 to vector<2x32xf32>
    %173 = arith.addf %172, %171 : vector<2x32xf32>
    %174 = arith.divf %172, %173 : vector<2x32xf32>
    %175 = arith.mulf %166, %149 : vector<2x32xf32>
    %176 = arith.mulf %160, %168 : vector<2x32xf32>
    %177 = arith.addf %175, %176 : vector<2x32xf32>
    %178 = math.tanh %177 : vector<2x32xf32>
    %179 = arith.mulf %174, %178 : vector<2x32xf32>
    %180 = vector.extract_strided_slice %7 {offsets = [12, 0], sizes = [2, 128], strides = [1, 1]} : vector<16x128xf32> to vector<2x128xf32>
    %cst_36 = arith.constant dense<0.000000e+00> : vector<2x128xf32>
    %181 = tpu.matmul %179, %9, %cst_36 {dimension_numbers = #tpu.dot_dimension_numbers<[1], [0], [0], [1], [0, 0, 1, 1], [], []>} : vector<2x32xf32>, vector<32x128xf32>, vector<2x128xf32> -> vector<2x128xf32>
    %182 = arith.addf %180, %181 : vector<2x128xf32>
    %183 = vector.extract_strided_slice %182 {offsets = [0, 0], sizes = [2, 32], strides = [1, 1]} : vector<2x128xf32> to vector<2x32xf32>
    %184 = arith.negf %183 : vector<2x32xf32>
    %185 = math.exp %184 : vector<2x32xf32>
    %cst_37 = arith.constant 1.000000e+00 : f32
    %186 = vector.broadcast %cst_37 : f32 to vector<2x32xf32>
    %187 = arith.addf %186, %185 : vector<2x32xf32>
    %188 = arith.divf %186, %187 : vector<2x32xf32>
    %189 = vector.extract_strided_slice %182 {offsets = [0, 32], sizes = [2, 32], strides = [1, 1]} : vector<2x128xf32> to vector<2x32xf32>
    %190 = arith.negf %189 : vector<2x32xf32>
    %191 = math.exp %190 : vector<2x32xf32>
    %cst_38 = arith.constant 1.000000e+00 : f32
    %192 = vector.broadcast %cst_38 : f32 to vector<2x32xf32>
    %193 = arith.addf %192, %191 : vector<2x32xf32>
    %194 = arith.divf %192, %193 : vector<2x32xf32>
    %195 = vector.extract_strided_slice %182 {offsets = [0, 64], sizes = [2, 32], strides = [1, 1]} : vector<2x128xf32> to vector<2x32xf32>
    %196 = math.tanh %195 : vector<2x32xf32>
    %197 = vector.extract_strided_slice %182 {offsets = [0, 96], sizes = [2, 32], strides = [1, 1]} : vector<2x128xf32> to vector<2x32xf32>
    %198 = arith.negf %197 : vector<2x32xf32>
    %199 = math.exp %198 : vector<2x32xf32>
    %cst_39 = arith.constant 1.000000e+00 : f32
    %200 = vector.broadcast %cst_39 : f32 to vector<2x32xf32>
    %201 = arith.addf %200, %199 : vector<2x32xf32>
    %202 = arith.divf %200, %201 : vector<2x32xf32>
    %203 = arith.mulf %194, %177 : vector<2x32xf32>
    %204 = arith.mulf %188, %196 : vector<2x32xf32>
    %205 = arith.addf %203, %204 : vector<2x32xf32>
    %206 = math.tanh %205 : vector<2x32xf32>
    %207 = arith.mulf %202, %206 : vector<2x32xf32>
    %208 = vector.extract_strided_slice %7 {offsets = [14, 0], sizes = [2, 128], strides = [1, 1]} : vector<16x128xf32> to vector<2x128xf32>
    %cst_40 = arith.constant dense<0.000000e+00> : vector<2x128xf32>
    %209 = tpu.matmul %207, %9, %cst_40 {dimension_numbers = #tpu.dot_dimension_numbers<[1], [0], [0], [1], [0, 0, 1, 1], [], []>} : vector<2x32xf32>, vector<32x128xf32>, vector<2x128xf32> -> vector<2x128xf32>
    %210 = arith.addf %208, %209 : vector<2x128xf32>
    %211 = vector.extract_strided_slice %210 {offsets = [0, 0], sizes = [2, 32], strides = [1, 1]} : vector<2x128xf32> to vector<2x32xf32>
    %212 = arith.negf %211 : vector<2x32xf32>
    %213 = math.exp %212 : vector<2x32xf32>
    %cst_41 = arith.constant 1.000000e+00 : f32
    %214 = vector.broadcast %cst_41 : f32 to vector<2x32xf32>
    %215 = arith.addf %214, %213 : vector<2x32xf32>
    %216 = arith.divf %214, %215 : vector<2x32xf32>
    %217 = vector.extract_strided_slice %210 {offsets = [0, 32], sizes = [2, 32], strides = [1, 1]} : vector<2x128xf32> to vector<2x32xf32>
    %218 = arith.negf %217 : vector<2x32xf32>
    %219 = math.exp %218 : vector<2x32xf32>
    %cst_42 = arith.constant 1.000000e+00 : f32
    %220 = vector.broadcast %cst_42 : f32 to vector<2x32xf32>
    %221 = arith.addf %220, %219 : vector<2x32xf32>
    %222 = arith.divf %220, %221 : vector<2x32xf32>
    %223 = vector.extract_strided_slice %210 {offsets = [0, 64], sizes = [2, 32], strides = [1, 1]} : vector<2x128xf32> to vector<2x32xf32>
    %224 = math.tanh %223 : vector<2x32xf32>
    %225 = vector.extract_strided_slice %210 {offsets = [0, 96], sizes = [2, 32], strides = [1, 1]} : vector<2x128xf32> to vector<2x32xf32>
    %226 = arith.negf %225 : vector<2x32xf32>
    %227 = math.exp %226 : vector<2x32xf32>
    %cst_43 = arith.constant 1.000000e+00 : f32
    %228 = vector.broadcast %cst_43 : f32 to vector<2x32xf32>
    %229 = arith.addf %228, %227 : vector<2x32xf32>
    %230 = arith.divf %228, %229 : vector<2x32xf32>
    %231 = arith.mulf %222, %205 : vector<2x32xf32>
    %232 = arith.mulf %216, %224 : vector<2x32xf32>
    %233 = arith.addf %231, %232 : vector<2x32xf32>
    %234 = math.tanh %233 : vector<2x32xf32>
    %235 = arith.mulf %230, %234 : vector<2x32xf32>
    %236 = tpu.concatenate %39, %67, %95, %123, %151, %179, %207, %235 in 0 : vector<2x32xf32>, vector<2x32xf32>, vector<2x32xf32>, vector<2x32xf32>, vector<2x32xf32>, vector<2x32xf32>, vector<2x32xf32>, vector<2x32xf32> -> vector<16x32xf32>
    %c1 = arith.constant 1 : index
    %c0_44 = arith.constant 0 : index
    %c0_45 = arith.constant 0 : index
    %237 = vector.load %arg1[%c1, %c0_44, %c0_45] : memref<2x32x128xf32, #tpu.memory_space<vmem>>, vector<1x32x128xf32>
    %238 = vector.shape_cast %237 : vector<1x32x128xf32> to vector<32x128xf32>
    %cst_46 = arith.constant dense<0.000000e+00> : vector<16x128xf32>
    %239 = tpu.matmul %236, %238, %cst_46 {dimension_numbers = #tpu.dot_dimension_numbers<[1], [0], [0], [1], [0, 0, 1, 1], [], []>} : vector<16x32xf32>, vector<32x128xf32>, vector<16x128xf32> -> vector<16x128xf32>
    %c1_47 = arith.constant 1 : index
    %c0_48 = arith.constant 0 : index
    %c0_49 = arith.constant 0 : index
    %240 = vector.load %arg3[%c1_47, %c0_48, %c0_49] : memref<2x1x128xf32, #tpu.memory_space<vmem>>, vector<1x1x128xf32>
    %241 = vector.shape_cast %240 : vector<1x1x128xf32> to vector<1x128xf32>
    %242 = vector.broadcast %241 : vector<1x128xf32> to vector<16x128xf32>
    %243 = arith.addf %239, %242 : vector<16x128xf32>
    %c1_50 = arith.constant 1 : index
    %c0_51 = arith.constant 0 : index
    %c0_52 = arith.constant 0 : index
    %244 = vector.load %arg2[%c1_50, %c0_51, %c0_52] : memref<2x32x128xf32, #tpu.memory_space<vmem>>, vector<1x32x128xf32>
    %245 = vector.shape_cast %244 : vector<1x32x128xf32> to vector<32x128xf32>
    %cst_53 = arith.constant 0.000000e+00 : f32
    %246 = vector.broadcast %cst_53 : f32 to vector<2x32xf32>
    %cst_54 = arith.constant 0.000000e+00 : f32
    %247 = vector.broadcast %cst_54 : f32 to vector<2x32xf32>
    %248 = vector.extract_strided_slice %243 {offsets = [0, 0], sizes = [2, 128], strides = [1, 1]} : vector<16x128xf32> to vector<2x128xf32>
    %cst_55 = arith.constant dense<0.000000e+00> : vector<2x128xf32>
    %249 = tpu.matmul %246, %245, %cst_55 {dimension_numbers = #tpu.dot_dimension_numbers<[1], [0], [0], [1], [0, 0, 1, 1], [], []>} : vector<2x32xf32>, vector<32x128xf32>, vector<2x128xf32> -> vector<2x128xf32>
    %250 = arith.addf %248, %249 : vector<2x128xf32>
    %251 = vector.extract_strided_slice %250 {offsets = [0, 0], sizes = [2, 32], strides = [1, 1]} : vector<2x128xf32> to vector<2x32xf32>
    %252 = arith.negf %251 : vector<2x32xf32>
    %253 = math.exp %252 : vector<2x32xf32>
    %cst_56 = arith.constant 1.000000e+00 : f32
    %254 = vector.broadcast %cst_56 : f32 to vector<2x32xf32>
    %255 = arith.addf %254, %253 : vector<2x32xf32>
    %256 = arith.divf %254, %255 : vector<2x32xf32>
    %257 = vector.extract_strided_slice %250 {offsets = [0, 32], sizes = [2, 32], strides = [1, 1]} : vector<2x128xf32> to vector<2x32xf32>
    %258 = arith.negf %257 : vector<2x32xf32>
    %259 = math.exp %258 : vector<2x32xf32>
    %cst_57 = arith.constant 1.000000e+00 : f32
    %260 = vector.broadcast %cst_57 : f32 to vector<2x32xf32>
    %261 = arith.addf %260, %259 : vector<2x32xf32>
    %262 = arith.divf %260, %261 : vector<2x32xf32>
    %263 = vector.extract_strided_slice %250 {offsets = [0, 64], sizes = [2, 32], strides = [1, 1]} : vector<2x128xf32> to vector<2x32xf32>
    %264 = math.tanh %263 : vector<2x32xf32>
    %265 = vector.extract_strided_slice %250 {offsets = [0, 96], sizes = [2, 32], strides = [1, 1]} : vector<2x128xf32> to vector<2x32xf32>
    %266 = arith.negf %265 : vector<2x32xf32>
    %267 = math.exp %266 : vector<2x32xf32>
    %cst_58 = arith.constant 1.000000e+00 : f32
    %268 = vector.broadcast %cst_58 : f32 to vector<2x32xf32>
    %269 = arith.addf %268, %267 : vector<2x32xf32>
    %270 = arith.divf %268, %269 : vector<2x32xf32>
    %271 = arith.mulf %262, %247 : vector<2x32xf32>
    %272 = arith.mulf %256, %264 : vector<2x32xf32>
    %273 = arith.addf %271, %272 : vector<2x32xf32>
    %274 = math.tanh %273 : vector<2x32xf32>
    %275 = arith.mulf %270, %274 : vector<2x32xf32>
    %276 = vector.extract_strided_slice %243 {offsets = [2, 0], sizes = [2, 128], strides = [1, 1]} : vector<16x128xf32> to vector<2x128xf32>
    %cst_59 = arith.constant dense<0.000000e+00> : vector<2x128xf32>
    %277 = tpu.matmul %275, %245, %cst_59 {dimension_numbers = #tpu.dot_dimension_numbers<[1], [0], [0], [1], [0, 0, 1, 1], [], []>} : vector<2x32xf32>, vector<32x128xf32>, vector<2x128xf32> -> vector<2x128xf32>
    %278 = arith.addf %276, %277 : vector<2x128xf32>
    %279 = vector.extract_strided_slice %278 {offsets = [0, 0], sizes = [2, 32], strides = [1, 1]} : vector<2x128xf32> to vector<2x32xf32>
    %280 = arith.negf %279 : vector<2x32xf32>
    %281 = math.exp %280 : vector<2x32xf32>
    %cst_60 = arith.constant 1.000000e+00 : f32
    %282 = vector.broadcast %cst_60 : f32 to vector<2x32xf32>
    %283 = arith.addf %282, %281 : vector<2x32xf32>
    %284 = arith.divf %282, %283 : vector<2x32xf32>
    %285 = vector.extract_strided_slice %278 {offsets = [0, 32], sizes = [2, 32], strides = [1, 1]} : vector<2x128xf32> to vector<2x32xf32>
    %286 = arith.negf %285 : vector<2x32xf32>
    %287 = math.exp %286 : vector<2x32xf32>
    %cst_61 = arith.constant 1.000000e+00 : f32
    %288 = vector.broadcast %cst_61 : f32 to vector<2x32xf32>
    %289 = arith.addf %288, %287 : vector<2x32xf32>
    %290 = arith.divf %288, %289 : vector<2x32xf32>
    %291 = vector.extract_strided_slice %278 {offsets = [0, 64], sizes = [2, 32], strides = [1, 1]} : vector<2x128xf32> to vector<2x32xf32>
    %292 = math.tanh %291 : vector<2x32xf32>
    %293 = vector.extract_strided_slice %278 {offsets = [0, 96], sizes = [2, 32], strides = [1, 1]} : vector<2x128xf32> to vector<2x32xf32>
    %294 = arith.negf %293 : vector<2x32xf32>
    %295 = math.exp %294 : vector<2x32xf32>
    %cst_62 = arith.constant 1.000000e+00 : f32
    %296 = vector.broadcast %cst_62 : f32 to vector<2x32xf32>
    %297 = arith.addf %296, %295 : vector<2x32xf32>
    %298 = arith.divf %296, %297 : vector<2x32xf32>
    %299 = arith.mulf %290, %273 : vector<2x32xf32>
    %300 = arith.mulf %284, %292 : vector<2x32xf32>
    %301 = arith.addf %299, %300 : vector<2x32xf32>
    %302 = math.tanh %301 : vector<2x32xf32>
    %303 = arith.mulf %298, %302 : vector<2x32xf32>
    %304 = vector.extract_strided_slice %243 {offsets = [4, 0], sizes = [2, 128], strides = [1, 1]} : vector<16x128xf32> to vector<2x128xf32>
    %cst_63 = arith.constant dense<0.000000e+00> : vector<2x128xf32>
    %305 = tpu.matmul %303, %245, %cst_63 {dimension_numbers = #tpu.dot_dimension_numbers<[1], [0], [0], [1], [0, 0, 1, 1], [], []>} : vector<2x32xf32>, vector<32x128xf32>, vector<2x128xf32> -> vector<2x128xf32>
    %306 = arith.addf %304, %305 : vector<2x128xf32>
    %307 = vector.extract_strided_slice %306 {offsets = [0, 0], sizes = [2, 32], strides = [1, 1]} : vector<2x128xf32> to vector<2x32xf32>
    %308 = arith.negf %307 : vector<2x32xf32>
    %309 = math.exp %308 : vector<2x32xf32>
    %cst_64 = arith.constant 1.000000e+00 : f32
    %310 = vector.broadcast %cst_64 : f32 to vector<2x32xf32>
    %311 = arith.addf %310, %309 : vector<2x32xf32>
    %312 = arith.divf %310, %311 : vector<2x32xf32>
    %313 = vector.extract_strided_slice %306 {offsets = [0, 32], sizes = [2, 32], strides = [1, 1]} : vector<2x128xf32> to vector<2x32xf32>
    %314 = arith.negf %313 : vector<2x32xf32>
    %315 = math.exp %314 : vector<2x32xf32>
    %cst_65 = arith.constant 1.000000e+00 : f32
    %316 = vector.broadcast %cst_65 : f32 to vector<2x32xf32>
    %317 = arith.addf %316, %315 : vector<2x32xf32>
    %318 = arith.divf %316, %317 : vector<2x32xf32>
    %319 = vector.extract_strided_slice %306 {offsets = [0, 64], sizes = [2, 32], strides = [1, 1]} : vector<2x128xf32> to vector<2x32xf32>
    %320 = math.tanh %319 : vector<2x32xf32>
    %321 = vector.extract_strided_slice %306 {offsets = [0, 96], sizes = [2, 32], strides = [1, 1]} : vector<2x128xf32> to vector<2x32xf32>
    %322 = arith.negf %321 : vector<2x32xf32>
    %323 = math.exp %322 : vector<2x32xf32>
    %cst_66 = arith.constant 1.000000e+00 : f32
    %324 = vector.broadcast %cst_66 : f32 to vector<2x32xf32>
    %325 = arith.addf %324, %323 : vector<2x32xf32>
    %326 = arith.divf %324, %325 : vector<2x32xf32>
    %327 = arith.mulf %318, %301 : vector<2x32xf32>
    %328 = arith.mulf %312, %320 : vector<2x32xf32>
    %329 = arith.addf %327, %328 : vector<2x32xf32>
    %330 = math.tanh %329 : vector<2x32xf32>
    %331 = arith.mulf %326, %330 : vector<2x32xf32>
    %332 = vector.extract_strided_slice %243 {offsets = [6, 0], sizes = [2, 128], strides = [1, 1]} : vector<16x128xf32> to vector<2x128xf32>
    %cst_67 = arith.constant dense<0.000000e+00> : vector<2x128xf32>
    %333 = tpu.matmul %331, %245, %cst_67 {dimension_numbers = #tpu.dot_dimension_numbers<[1], [0], [0], [1], [0, 0, 1, 1], [], []>} : vector<2x32xf32>, vector<32x128xf32>, vector<2x128xf32> -> vector<2x128xf32>
    %334 = arith.addf %332, %333 : vector<2x128xf32>
    %335 = vector.extract_strided_slice %334 {offsets = [0, 0], sizes = [2, 32], strides = [1, 1]} : vector<2x128xf32> to vector<2x32xf32>
    %336 = arith.negf %335 : vector<2x32xf32>
    %337 = math.exp %336 : vector<2x32xf32>
    %cst_68 = arith.constant 1.000000e+00 : f32
    %338 = vector.broadcast %cst_68 : f32 to vector<2x32xf32>
    %339 = arith.addf %338, %337 : vector<2x32xf32>
    %340 = arith.divf %338, %339 : vector<2x32xf32>
    %341 = vector.extract_strided_slice %334 {offsets = [0, 32], sizes = [2, 32], strides = [1, 1]} : vector<2x128xf32> to vector<2x32xf32>
    %342 = arith.negf %341 : vector<2x32xf32>
    %343 = math.exp %342 : vector<2x32xf32>
    %cst_69 = arith.constant 1.000000e+00 : f32
    %344 = vector.broadcast %cst_69 : f32 to vector<2x32xf32>
    %345 = arith.addf %344, %343 : vector<2x32xf32>
    %346 = arith.divf %344, %345 : vector<2x32xf32>
    %347 = vector.extract_strided_slice %334 {offsets = [0, 64], sizes = [2, 32], strides = [1, 1]} : vector<2x128xf32> to vector<2x32xf32>
    %348 = math.tanh %347 : vector<2x32xf32>
    %349 = vector.extract_strided_slice %334 {offsets = [0, 96], sizes = [2, 32], strides = [1, 1]} : vector<2x128xf32> to vector<2x32xf32>
    %350 = arith.negf %349 : vector<2x32xf32>
    %351 = math.exp %350 : vector<2x32xf32>
    %cst_70 = arith.constant 1.000000e+00 : f32
    %352 = vector.broadcast %cst_70 : f32 to vector<2x32xf32>
    %353 = arith.addf %352, %351 : vector<2x32xf32>
    %354 = arith.divf %352, %353 : vector<2x32xf32>
    %355 = arith.mulf %346, %329 : vector<2x32xf32>
    %356 = arith.mulf %340, %348 : vector<2x32xf32>
    %357 = arith.addf %355, %356 : vector<2x32xf32>
    %358 = math.tanh %357 : vector<2x32xf32>
    %359 = arith.mulf %354, %358 : vector<2x32xf32>
    %360 = vector.extract_strided_slice %243 {offsets = [8, 0], sizes = [2, 128], strides = [1, 1]} : vector<16x128xf32> to vector<2x128xf32>
    %cst_71 = arith.constant dense<0.000000e+00> : vector<2x128xf32>
    %361 = tpu.matmul %359, %245, %cst_71 {dimension_numbers = #tpu.dot_dimension_numbers<[1], [0], [0], [1], [0, 0, 1, 1], [], []>} : vector<2x32xf32>, vector<32x128xf32>, vector<2x128xf32> -> vector<2x128xf32>
    %362 = arith.addf %360, %361 : vector<2x128xf32>
    %363 = vector.extract_strided_slice %362 {offsets = [0, 0], sizes = [2, 32], strides = [1, 1]} : vector<2x128xf32> to vector<2x32xf32>
    %364 = arith.negf %363 : vector<2x32xf32>
    %365 = math.exp %364 : vector<2x32xf32>
    %cst_72 = arith.constant 1.000000e+00 : f32
    %366 = vector.broadcast %cst_72 : f32 to vector<2x32xf32>
    %367 = arith.addf %366, %365 : vector<2x32xf32>
    %368 = arith.divf %366, %367 : vector<2x32xf32>
    %369 = vector.extract_strided_slice %362 {offsets = [0, 32], sizes = [2, 32], strides = [1, 1]} : vector<2x128xf32> to vector<2x32xf32>
    %370 = arith.negf %369 : vector<2x32xf32>
    %371 = math.exp %370 : vector<2x32xf32>
    %cst_73 = arith.constant 1.000000e+00 : f32
    %372 = vector.broadcast %cst_73 : f32 to vector<2x32xf32>
    %373 = arith.addf %372, %371 : vector<2x32xf32>
    %374 = arith.divf %372, %373 : vector<2x32xf32>
    %375 = vector.extract_strided_slice %362 {offsets = [0, 64], sizes = [2, 32], strides = [1, 1]} : vector<2x128xf32> to vector<2x32xf32>
    %376 = math.tanh %375 : vector<2x32xf32>
    %377 = vector.extract_strided_slice %362 {offsets = [0, 96], sizes = [2, 32], strides = [1, 1]} : vector<2x128xf32> to vector<2x32xf32>
    %378 = arith.negf %377 : vector<2x32xf32>
    %379 = math.exp %378 : vector<2x32xf32>
    %cst_74 = arith.constant 1.000000e+00 : f32
    %380 = vector.broadcast %cst_74 : f32 to vector<2x32xf32>
    %381 = arith.addf %380, %379 : vector<2x32xf32>
    %382 = arith.divf %380, %381 : vector<2x32xf32>
    %383 = arith.mulf %374, %357 : vector<2x32xf32>
    %384 = arith.mulf %368, %376 : vector<2x32xf32>
    %385 = arith.addf %383, %384 : vector<2x32xf32>
    %386 = math.tanh %385 : vector<2x32xf32>
    %387 = arith.mulf %382, %386 : vector<2x32xf32>
    %388 = vector.extract_strided_slice %243 {offsets = [10, 0], sizes = [2, 128], strides = [1, 1]} : vector<16x128xf32> to vector<2x128xf32>
    %cst_75 = arith.constant dense<0.000000e+00> : vector<2x128xf32>
    %389 = tpu.matmul %387, %245, %cst_75 {dimension_numbers = #tpu.dot_dimension_numbers<[1], [0], [0], [1], [0, 0, 1, 1], [], []>} : vector<2x32xf32>, vector<32x128xf32>, vector<2x128xf32> -> vector<2x128xf32>
    %390 = arith.addf %388, %389 : vector<2x128xf32>
    %391 = vector.extract_strided_slice %390 {offsets = [0, 0], sizes = [2, 32], strides = [1, 1]} : vector<2x128xf32> to vector<2x32xf32>
    %392 = arith.negf %391 : vector<2x32xf32>
    %393 = math.exp %392 : vector<2x32xf32>
    %cst_76 = arith.constant 1.000000e+00 : f32
    %394 = vector.broadcast %cst_76 : f32 to vector<2x32xf32>
    %395 = arith.addf %394, %393 : vector<2x32xf32>
    %396 = arith.divf %394, %395 : vector<2x32xf32>
    %397 = vector.extract_strided_slice %390 {offsets = [0, 32], sizes = [2, 32], strides = [1, 1]} : vector<2x128xf32> to vector<2x32xf32>
    %398 = arith.negf %397 : vector<2x32xf32>
    %399 = math.exp %398 : vector<2x32xf32>
    %cst_77 = arith.constant 1.000000e+00 : f32
    %400 = vector.broadcast %cst_77 : f32 to vector<2x32xf32>
    %401 = arith.addf %400, %399 : vector<2x32xf32>
    %402 = arith.divf %400, %401 : vector<2x32xf32>
    %403 = vector.extract_strided_slice %390 {offsets = [0, 64], sizes = [2, 32], strides = [1, 1]} : vector<2x128xf32> to vector<2x32xf32>
    %404 = math.tanh %403 : vector<2x32xf32>
    %405 = vector.extract_strided_slice %390 {offsets = [0, 96], sizes = [2, 32], strides = [1, 1]} : vector<2x128xf32> to vector<2x32xf32>
    %406 = arith.negf %405 : vector<2x32xf32>
    %407 = math.exp %406 : vector<2x32xf32>
    %cst_78 = arith.constant 1.000000e+00 : f32
    %408 = vector.broadcast %cst_78 : f32 to vector<2x32xf32>
    %409 = arith.addf %408, %407 : vector<2x32xf32>
    %410 = arith.divf %408, %409 : vector<2x32xf32>
    %411 = arith.mulf %402, %385 : vector<2x32xf32>
    %412 = arith.mulf %396, %404 : vector<2x32xf32>
    %413 = arith.addf %411, %412 : vector<2x32xf32>
    %414 = math.tanh %413 : vector<2x32xf32>
    %415 = arith.mulf %410, %414 : vector<2x32xf32>
    %416 = vector.extract_strided_slice %243 {offsets = [12, 0], sizes = [2, 128], strides = [1, 1]} : vector<16x128xf32> to vector<2x128xf32>
    %cst_79 = arith.constant dense<0.000000e+00> : vector<2x128xf32>
    %417 = tpu.matmul %415, %245, %cst_79 {dimension_numbers = #tpu.dot_dimension_numbers<[1], [0], [0], [1], [0, 0, 1, 1], [], []>} : vector<2x32xf32>, vector<32x128xf32>, vector<2x128xf32> -> vector<2x128xf32>
    %418 = arith.addf %416, %417 : vector<2x128xf32>
    %419 = vector.extract_strided_slice %418 {offsets = [0, 0], sizes = [2, 32], strides = [1, 1]} : vector<2x128xf32> to vector<2x32xf32>
    %420 = arith.negf %419 : vector<2x32xf32>
    %421 = math.exp %420 : vector<2x32xf32>
    %cst_80 = arith.constant 1.000000e+00 : f32
    %422 = vector.broadcast %cst_80 : f32 to vector<2x32xf32>
    %423 = arith.addf %422, %421 : vector<2x32xf32>
    %424 = arith.divf %422, %423 : vector<2x32xf32>
    %425 = vector.extract_strided_slice %418 {offsets = [0, 32], sizes = [2, 32], strides = [1, 1]} : vector<2x128xf32> to vector<2x32xf32>
    %426 = arith.negf %425 : vector<2x32xf32>
    %427 = math.exp %426 : vector<2x32xf32>
    %cst_81 = arith.constant 1.000000e+00 : f32
    %428 = vector.broadcast %cst_81 : f32 to vector<2x32xf32>
    %429 = arith.addf %428, %427 : vector<2x32xf32>
    %430 = arith.divf %428, %429 : vector<2x32xf32>
    %431 = vector.extract_strided_slice %418 {offsets = [0, 64], sizes = [2, 32], strides = [1, 1]} : vector<2x128xf32> to vector<2x32xf32>
    %432 = math.tanh %431 : vector<2x32xf32>
    %433 = vector.extract_strided_slice %418 {offsets = [0, 96], sizes = [2, 32], strides = [1, 1]} : vector<2x128xf32> to vector<2x32xf32>
    %434 = arith.negf %433 : vector<2x32xf32>
    %435 = math.exp %434 : vector<2x32xf32>
    %cst_82 = arith.constant 1.000000e+00 : f32
    %436 = vector.broadcast %cst_82 : f32 to vector<2x32xf32>
    %437 = arith.addf %436, %435 : vector<2x32xf32>
    %438 = arith.divf %436, %437 : vector<2x32xf32>
    %439 = arith.mulf %430, %413 : vector<2x32xf32>
    %440 = arith.mulf %424, %432 : vector<2x32xf32>
    %441 = arith.addf %439, %440 : vector<2x32xf32>
    %442 = math.tanh %441 : vector<2x32xf32>
    %443 = arith.mulf %438, %442 : vector<2x32xf32>
    %444 = vector.extract_strided_slice %243 {offsets = [14, 0], sizes = [2, 128], strides = [1, 1]} : vector<16x128xf32> to vector<2x128xf32>
    %cst_83 = arith.constant dense<0.000000e+00> : vector<2x128xf32>
    %445 = tpu.matmul %443, %245, %cst_83 {dimension_numbers = #tpu.dot_dimension_numbers<[1], [0], [0], [1], [0, 0, 1, 1], [], []>} : vector<2x32xf32>, vector<32x128xf32>, vector<2x128xf32> -> vector<2x128xf32>
    %446 = arith.addf %444, %445 : vector<2x128xf32>
    %447 = vector.extract_strided_slice %446 {offsets = [0, 0], sizes = [2, 32], strides = [1, 1]} : vector<2x128xf32> to vector<2x32xf32>
    %448 = arith.negf %447 : vector<2x32xf32>
    %449 = math.exp %448 : vector<2x32xf32>
    %cst_84 = arith.constant 1.000000e+00 : f32
    %450 = vector.broadcast %cst_84 : f32 to vector<2x32xf32>
    %451 = arith.addf %450, %449 : vector<2x32xf32>
    %452 = arith.divf %450, %451 : vector<2x32xf32>
    %453 = vector.extract_strided_slice %446 {offsets = [0, 32], sizes = [2, 32], strides = [1, 1]} : vector<2x128xf32> to vector<2x32xf32>
    %454 = arith.negf %453 : vector<2x32xf32>
    %455 = math.exp %454 : vector<2x32xf32>
    %cst_85 = arith.constant 1.000000e+00 : f32
    %456 = vector.broadcast %cst_85 : f32 to vector<2x32xf32>
    %457 = arith.addf %456, %455 : vector<2x32xf32>
    %458 = arith.divf %456, %457 : vector<2x32xf32>
    %459 = vector.extract_strided_slice %446 {offsets = [0, 64], sizes = [2, 32], strides = [1, 1]} : vector<2x128xf32> to vector<2x32xf32>
    %460 = math.tanh %459 : vector<2x32xf32>
    %461 = vector.extract_strided_slice %446 {offsets = [0, 96], sizes = [2, 32], strides = [1, 1]} : vector<2x128xf32> to vector<2x32xf32>
    %462 = arith.negf %461 : vector<2x32xf32>
    %463 = math.exp %462 : vector<2x32xf32>
    %cst_86 = arith.constant 1.000000e+00 : f32
    %464 = vector.broadcast %cst_86 : f32 to vector<2x32xf32>
    %465 = arith.addf %464, %463 : vector<2x32xf32>
    %466 = arith.divf %464, %465 : vector<2x32xf32>
    %467 = arith.mulf %458, %441 : vector<2x32xf32>
    %468 = arith.mulf %452, %460 : vector<2x32xf32>
    %469 = arith.addf %467, %468 : vector<2x32xf32>
    %470 = math.tanh %469 : vector<2x32xf32>
    %471 = arith.mulf %466, %470 : vector<2x32xf32>
    %472 = tpu.concatenate %275, %303, %331, %359, %387, %415, %443, %471 in 0 : vector<2x32xf32>, vector<2x32xf32>, vector<2x32xf32>, vector<2x32xf32>, vector<2x32xf32>, vector<2x32xf32>, vector<2x32xf32>, vector<2x32xf32> -> vector<16x32xf32>
    %c0_87 = arith.constant 0 : index
    %c0_88 = arith.constant 0 : index
    %473 = vector.load %arg4[%c0_87, %c0_88] : memref<16x32xf32, #tpu.memory_space<vmem>>, vector<16x32xf32>
    tpu.vector_store %arg4[%c0_87, %c0_88], %472 {strides = array<i32>} : memref<16x32xf32, #tpu.memory_space<vmem>>, vector<16x32xf32>,
    return
  }
}

</mosaic_0001>

<llo_original>
// kernel: tpu_custom_call.1
$region0: #{tpu_custom_call.1}
  #allocation0 [shape = 'u32[]', space=smem, size = 0x4, offset = 0x4, fixed_abs, tag = 'smem constant byte address 0x4 - core index']
  #allocation1 [shape = 'u32[144,128]{1,0:T(1,128)}', space=vmem, size = 0x12000, scoped, tag = 'internal scratch']
  %s0 = inlined_call_operand.hbm [shape: f32[16,32], index: 0, kind: input, shape index: {}]
  %s1 = inlined_call_operand.hbm [shape: f32[2,32,128], index: 1, kind: input, shape index: {}]
  %s2 = inlined_call_operand.hbm [shape: f32[2,32,128], index: 2, kind: input, shape index: {}]
  %s3 = inlined_call_operand.vmem [shape: f32[2,1,128], index: 3, kind: input, shape index: {}]
  %s4 = inlined_call_operand.hbm [shape: f32[16,32], index: 4, kind: output, shape index: {}]
  %s5 = sld [smem:[#allocation0]]
  $region38: #{tpu_custom_call.1} parent=0
    _
  %s7 = ssub.s32 1, %s5
  %s8 = scalar_select 0, %s7, %s5
  $region1: #{tpu_custom_call.1} parent=0
    #allocation2 [shape = 'u8[8192]{0}', space=vmem, size = 0x2000, scoped, tag = 'input window, operand 0, single buffered']
    #allocation3 [shape = 's32[1]{0}', space=sflag, size = 0x4, scoped, tag = 'scoped memory for tpu_custom_call.1']
    #allocation4 [shape = 's32[1]{0}', space=sflag, size = 0x4, scoped, tag = 'scoped memory for tpu_custom_call.1']
    #allocation5 [shape = 'u8[32768]{0}', space=vmem, size = 0x8000, scoped, tag = 'input window, operand 1, single buffered']
    #allocation6 [shape = 's32[1]{0}', space=sflag, size = 0x4, scoped, tag = 'scoped memory for tpu_custom_call.1']
    #allocation7 [shape = 'u8[32768]{0}', space=vmem, size = 0x8000, scoped, tag = 'input window, operand 2, single buffered']
    #allocation8 [shape = 'u8[8192]{0}', space=vmem, size = 0x2000, scoped, tag = 'output window, operand 0, single buffered']
    %9 = vsyncpa [#allocation3], 0
    %10 = vsyncpa [#allocation6], 0
    %11 = vsyncpa [#allocation4], 0
    // Predicated region
    $region2: #{tpu_custom_call.1} parent=1 // pred_check
      _
    $region3: #{tpu_custom_call.1} parent=1 // pred_check_branch
      %13 = sbr.rel (0) target = $region5
    $region4: #{tpu_custom_call.1} parent=1 // pred_region
      %s15 = ssub.s32 256, 256
      %16 = vsyncadd [#allocation3], %s15
      %s17 = sshll.u32 [#allocation2], 4
      %s18 = int_to_ptr.vmem [resolvable:$true] %s17
      %23 = dma.hbm_to_vmem [thread:$0]  %s0, 256, %s18, [#allocation3], 128, 128, 8
    $region5: #{tpu_custom_call.1} parent=1 // pred_fallthru
      _
    // Predicated region
    $region6: #{tpu_custom_call.1} parent=1 // pred_check
      _
    $region7: #{tpu_custom_call.1} parent=1 // pred_check_branch
      %25 = sbr.rel (0) target = $region9
    $region8: #{tpu_custom_call.1} parent=1 // pred_region
      %s27 = ssub.s32 1024, 1024
      %28 = vsyncadd [#allocation6], %s27
      %s29 = sshll.u32 [#allocation5], 4
      %s30 = int_to_ptr.vmem [resolvable:$true] %s29
      %35 = dma.hbm_to_vmem [thread:$0]  %s1, 1024, %s30, [#allocation6], 128, 128, 8
    $region9: #{tpu_custom_call.1} parent=1 // pred_fallthru
      _
    // Predicated region
    $region10: #{tpu_custom_call.1} parent=1 // pred_check
      _
    $region11: #{tpu_custom_call.1} parent=1 // pred_check_branch
      %37 = sbr.rel (0) target = $region13
    $region12: #{tpu_custom_call.1} parent=1 // pred_region
      %s39 = ssub.s32 1024, 1024
      %40 = vsyncadd [#allocation6], %s39
      %s41 = sshll.u32 [#allocation7], 4
      %s42 = int_to_ptr.vmem [resolvable:$true] %s41
      %47 = dma.hbm_to_vmem [thread:$0]  %s2, 1024, %s42, [#allocation6], 128, 128, 8
    $region13: #{tpu_custom_call.1} parent=1 // pred_fallthru
      _
    // Predicated region
    $region14: #{tpu_custom_call.1} parent=1 // pred_check
      _
    $region15: #{tpu_custom_call.1} parent=1 // pred_check_branch
      %49 = sbr.rel (0) target = $region17
    $region16: #{tpu_custom_call.1} parent=1 // pred_region
      _
    $region17: #{tpu_custom_call.1} parent=1 // pred_fallthru
      _
    // Predicated region
    $region18: #{tpu_custom_call.1} parent=1 // pred_check
      _
    $region19: #{tpu_custom_call.1} parent=1 // pred_check_branch
      %51 = sbr.rel (0) target = $region21
    $region20: #{tpu_custom_call.1} parent=1 // pred_region
      %52 = dma.done [#allocation3], 256
    $region21: #{tpu_custom_call.1} parent=1 // pred_fallthru
      _
    // Predicated region
    $region22: #{tpu_custom_call.1} parent=1 // pred_check
      _
    $region23: #{tpu_custom_call.1} parent=1 // pred_check_branch
      %54 = sbr.rel (0) target = $region25
    $region24: #{tpu_custom_call.1} parent=1 // pred_region
      %55 = dma.done [#allocation6], 1024
    $region25: #{tpu_custom_call.1} parent=1 // pred_fallthru
      _
    // Predicated region
    $region26: #{tpu_custom_call.1} parent=1 // pred_check
      _
    $region27: #{tpu_custom_call.1} parent=1 // pred_check_branch
      %57 = sbr.rel (0) target = $region29
    $region28: #{tpu_custom_call.1} parent=1 // pred_region
      %58 = dma.done [#allocation6], 1024
    $region29: #{tpu_custom_call.1} parent=1 // pred_fallthru
      _
    %v59 = vld [vmem:[#allocation2] sm:$0xff]
    %v60 = vld [vmem:[#allocation2 + $0x8] sm:$0xff]
    %v61 = vld [vmem:[#allocation5] sm:$0xff]
    %v62 = vld [vmem:[#allocation5 + $0x8] sm:$0xff]
    %v63 = vld [vmem:[#allocation5 + $0x10] sm:$0xff]
    %v64 = vld [vmem:[#allocation5 + $0x18] sm:$0xff]
    %v65 = vld [vmem:[%s3] sm:$0x1]
    %v67 = vlaneseq
    %v68 = vshrl.u32 %v67, 7
    %v69 = vsub.s32 0, %v68
    %v70 = vrot.slane %v65, %v69
    %vm72 = vcmask 261120
    %v74 = vsel %vm72, %v59, 0
    %v77 = vsel %vm72, %v60, 0
    %79 = vmatprep.subr.mxu0 0.0
    %80 = vmatpush1.msra.mxu0 %v61
    %81 = vmatprep.subr.mxu0 0.0
    %82 = vmatpush1.msra.mxu0 %v62
    %83 = vmatprep.subr.mxu0 0.0
    %84 = vmatpush1.msra.mxu0 %v63
    %85 = vmatprep.subr.mxu0 0.0
    %86 = vmatpush1.msra.mxu0 %v64
    %87 = vmatprep.subr.mxu0 0.0
    %88 = vmatpush1.msra.mxu0 0.0
    %89 = vmatprep.subr.mxu0 0.0
    %90 = vmatpush1.msra.mxu0 0.0
    %91 = vmatprep.subr.mxu0 0.0
    %92 = vmatpush1.msra.mxu0 0.0
    %93 = vmatprep.subr.mxu0 0.0
    %94 = vmatpush1.msra.mxu0 0.0
    %95 = vmatprep.subr.mxu0 0.0
    %96 = vmatpush1.msra.mxu0 0.0
    %97 = vmatprep.subr.mxu0 0.0
    %98 = vmatpush1.msra.mxu0 0.0
    %99 = vmatprep.subr.mxu0 0.0
    %100 = vmatpush1.msra.mxu0 0.0
    %101 = vmatprep.subr.mxu0 0.0
    %102 = vmatpush1.msra.mxu0 0.0
    %103 = vmatprep.subr.mxu0 0.0
    %104 = vmatpush1.msra.mxu0 0.0
    %105 = vmatprep.subr.mxu0 0.0
    %106 = vmatpush1.msra.mxu0 0.0
    %107 = vmatprep.subr.mxu0 0.0
    %108 = vmatpush1.msra.mxu0 0.0
    %109 = vmatprep.subr.mxu0 0.0
    %110 = vmatpush1.msra.mxu0 0.0
    %111 = vmatprep.subr.mxu0 0.0
    %112 = vmatpush1.msra.mxu0 0.0
    %113 = vmatprep.subr.mxu0 0.0
    %114 = vmatpush1.msra.mxu0 0.0
    %115 = vmatprep.subr.mxu0 0.0
    %116 = vmatpush1.msra.mxu0 0.0
    %117 = vmatprep.subr.mxu0 0.0
    %118 = vmatpush1.msra.mxu0 0.0
    %119 = vmatprep.subr.mxu0 0.0
    %120 = vmatpush1.msra.mxu0 0.0
    %121 = vmatprep.subr.mxu0 0.0
    %122 = vmatpush1.msra.mxu0 0.0
    %123 = vmatprep.subr.mxu0 0.0
    %124 = vmatpush1.msra.mxu0 0.0
    %125 = vmatprep.subr.mxu0 0.0
    %126 = vmatpush1.msra.mxu0 0.0
    %127 = vmatprep.subr.mxu0 0.0
    %128 = vmatpush1.msra.mxu0 0.0
    %129 = vmatprep.subr.mxu0 0.0
    %130 = vmatpush1.msra.mxu0 0.0
    %131 = vmatprep.subr.mxu0 0.0
    %132 = vmatpush1.msra.mxu0 0.0
    %133 = vmatprep.subr.mxu0 0.0
    %134 = vmatpush1.msra.mxu0 0.0
    %135 = vmatprep.subr.mxu0 0.0
    %136 = vmatpush1.msra.mxu0 0.0
    %137 = vmatprep.subr.mxu0 0.0
    %138 = vmatpush1.msra.mxu0 0.0
    %139 = vmatprep.subr.mxu0 0.0
    %140 = vmatpush1.msra.mxu0 0.0
    %141 = vmatprep.subr.mxu0 0.0
    %142 = vmatpush1.msra.mxu0 0.0
    %143 = vmatprep.mubr.f32.mxu0 0.0
    %144 = vmatmul.mubr.f32.gmra.mrb[0].mxu0 %v74
    %v145 = vpop.f32.mrb[0].mxu0
    %v146 = vadd.f32 %v70, %v145
    %v147 = vpop.f32.mrb[0].mxu0
    %148 = vmatprep.mubr.f32.mxu0 0.0
    %149 = vmatmul.mubr.f32.gmra.mrb[0].mxu0 %v77
    %v150 = vpop.f32.mrb[0].mxu0
    %v151 = vadd.f32 %v70, %v150
    %v152 = vpop.f32.mrb[0].mxu0
    %153 = vdwg.mxu0
    %v154 = vld [vmem:[#allocation7] sm:$0xff]
    %v155 = vld [vmem:[#allocation7 + $0x8] sm:$0xff]
    %v156 = vld [vmem:[#allocation7 + $0x10] sm:$0xff]
    %v157 = vld [vmem:[#allocation7 + $0x18] sm:$0xff]
    %v159 = vsel %vm72, 0.0, 0
    %161 = vmatprep.subr.mxu0 0.0
    %162 = vmatpush1.msra.mxu0 %v154
    %163 = vmatprep.subr.mxu0 0.0
    %164 = vmatpush1.msra.mxu0 %v155
    %165 = vmatprep.subr.mxu0 0.0
    %166 = vmatpush1.msra.mxu0 %v156
    %167 = vmatprep.subr.mxu0 0.0
    %168 = vmatpush1.msra.mxu0 %v157
    %169 = vmatprep.subr.mxu0 0.0
    %170 = vmatpush1.msra.mxu0 0.0
    %171 = vmatprep.subr.mxu0 0.0
    %172 = vmatpush1.msra.mxu0 0.0
    %173 = vmatprep.subr.mxu0 0.0
    %174 = vmatpush1.msra.mxu0 0.0
    %175 = vmatprep.subr.mxu0 0.0
    %176 = vmatpush1.msra.mxu0 0.0
    %177 = vmatprep.subr.mxu0 0.0
    %178 = vmatpush1.msra.mxu0 0.0
    %179 = vmatprep.subr.mxu0 0.0
    %180 = vmatpush1.msra.mxu0 0.0
    %181 = vmatprep.subr.mxu0 0.0
    %182 = vmatpush1.msra.mxu0 0.0
    %183 = vmatprep.subr.mxu0 0.0
    %184 = vmatpush1.msra.mxu0 0.0
    %185 = vmatprep.subr.mxu0 0.0
    %186 = vmatpush1.msra.mxu0 0.0
    %187 = vmatprep.subr.mxu0 0.0
    %188 = vmatpush1.msra.mxu0 0.0
    %189 = vmatprep.subr.mxu0 0.0
    %190 = vmatpush1.msra.mxu0 0.0
    %191 = vmatprep.subr.mxu0 0.0
    %192 = vmatpush1.msra.mxu0 0.0
    %193 = vmatprep.subr.mxu0 0.0
    %194 = vmatpush1.msra.mxu0 0.0
    %195 = vmatprep.subr.mxu0 0.0
    %196 = vmatpush1.msra.mxu0 0.0
    %197 = vmatprep.subr.mxu0 0.0
    %198 = vmatpush1.msra.mxu0 0.0
    %199 = vmatprep.subr.mxu0 0.0
    %200 = vmatpush1.msra.mxu0 0.0
    %201 = vmatprep.subr.mxu0 0.0
    %202 = vmatpush1.msra.mxu0 0.0
    %203 = vmatprep.subr.mxu0 0.0
    %204 = vmatpush1.msra.mxu0 0.0
    %205 = vmatprep.subr.mxu0 0.0
    %206 = vmatpush1.msra.mxu0 0.0
    %207 = vmatprep.subr.mxu0 0.0
    %208 = vmatpush1.msra.mxu0 0.0
    %209 = vmatprep.subr.mxu0 0.0
    %210 = vmatpush1.msra.mxu0 0.0
    %211 = vmatprep.subr.mxu0 0.0
    %212 = vmatpush1.msra.mxu0 0.0
    %213 = vmatprep.subr.mxu0 0.0
    %214 = vmatpush1.msra.mxu0 0.0
    %215 = vmatprep.subr.mxu0 0.0
    %216 = vmatpush1.msra.mxu0 0.0
    %217 = vmatprep.subr.mxu0 0.0
    %218 = vmatpush1.msra.mxu0 0.0
    %219 = vmatprep.subr.mxu0 0.0
    %220 = vmatpush1.msra.mxu0 0.0
    %221 = vmatprep.subr.mxu0 0.0
    %222 = vmatpush1.msra.mxu0 0.0
    %223 = vmatprep.subr.mxu0 0.0
    %224 = vmatpush1.msra.mxu0 0.0
    %225 = vmatprep.mubr.f32.mxu0 0.0
    %226 = vmatmul.mubr.f32.gmra.mrb[0].mxu0 %v159
    %v227 = vpop.f32.mrb[0].mxu0
    %v228 = vadd.f32 0.0, %v227
    %v229 = vpop.f32.mrb[0].mxu0
    %230 = vdwg.mxu0
    %v231 = vadd.f32 %v146, %v228
    %v232 = vxor.u32 %v231, 2147483648
    %v233 = vmul.f32 %v232, 1.442695
    %v234 = vpow.pop %v233
    %v235 = vadd.f32 %v234, 1.0
    %v236 = vrcp.pop %v235
    %v237 = vmul.f32 1.0, %v236
    %v238 = vtanh.pop %v231
    %v239 = vmul.f32 %v237, 0.0
    %241 = vrot.lane.b32.xlu0 %v238, 64
    %v242 = vpop.permute.xlu0 %241
    %v244 = vmul.f32 %v237, %v242
    %246 = vrot.lane.b32.xlu0 %v244, 32
    %v247 = vpop.permute.xlu0 %246
    %v249 = vadd.f32 %v239, %v247
    %v250 = vtanh.pop %v249
    %252 = vrot.lane.b32.xlu0 %v250, 64
    %v253 = vpop.permute.xlu0 %252
    %v255 = vmul.f32 %v237, %v253
    %257 = vrot.lane.b32.xlu0 %v255, 32
    %v258 = vpop.permute.xlu0 %257
    %v259 = vsel %vm72, %v258, 0
    %261 = vmatprep.subr.mxu0 0.0
    %262 = vmatpush1.msra.mxu0 %v154
    %263 = vmatprep.subr.mxu0 0.0
    %264 = vmatpush1.msra.mxu0 %v155
    %265 = vmatprep.subr.mxu0 0.0
    %266 = vmatpush1.msra.mxu0 %v156
    %267 = vmatprep.subr.mxu0 0.0
    %268 = vmatpush1.msra.mxu0 %v157
    %269 = vmatprep.subr.mxu0 0.0
    %270 = vmatpush1.msra.mxu0 0.0
    %271 = vmatprep.subr.mxu0 0.0
    %272 = vmatpush1.msra.mxu0 0.0
    %273 = vmatprep.subr.mxu0 0.0
    %274 = vmatpush1.msra.mxu0 0.0
    %275 = vmatprep.subr.mxu0 0.0
    %276 = vmatpush1.msra.mxu0 0.0
    %277 = vmatprep.subr.mxu0 0.0
    %278 = vmatpush1.msra.mxu0 0.0
    %279 = vmatprep.subr.mxu0 0.0
    %280 = vmatpush1.msra.mxu0 0.0
    %281 = vmatprep.subr.mxu0 0.0
    %282 = vmatpush1.msra.mxu0 0.0
    %283 = vmatprep.subr.mxu0 0.0
    %284 = vmatpush1.msra.mxu0 0.0
    %285 = vmatprep.subr.mxu0 0.0
    %286 = vmatpush1.msra.mxu0 0.0
    %287 = vmatprep.subr.mxu0 0.0
    %288 = vmatpush1.msra.mxu0 0.0
    %289 = vmatprep.subr.mxu0 0.0
    %290 = vmatpush1.msra.mxu0 0.0
    %291 = vmatprep.subr.mxu0 0.0
    %292 = vmatpush1.msra.mxu0 0.0
    %293 = vmatprep.subr.mxu0 0.0
    %294 = vmatpush1.msra.mxu0 0.0
    %295 = vmatprep.subr.mxu0 0.0
    %296 = vmatpush1.msra.mxu0 0.0
    %297 = vmatprep.subr.mxu0 0.0
    %298 = vmatpush1.msra.mxu0 0.0
    %299 = vmatprep.subr.mxu0 0.0
    %300 = vmatpush1.msra.mxu0 0.0
    %301 = vmatprep.subr.mxu0 0.0
    %302 = vmatpush1.msra.mxu0 0.0
    %303 = vmatprep.subr.mxu0 0.0
    %304 = vmatpush1.msra.mxu0 0.0
    %305 = vmatprep.subr.mxu0 0.0
    %306 = vmatpush1.msra.mxu0 0.0
    %307 = vmatprep.subr.mxu0 0.0
    %308 = vmatpush1.msra.mxu0 0.0
    %309 = vmatprep.subr.mxu0 0.0
    %310 = vmatpush1.msra.mxu0 0.0
    %311 = vmatprep.subr.mxu0 0.0
    %312 = vmatpush1.msra.mxu0 0.0
    %313 = vmatprep.subr.mxu0 0.0
    %314 = vmatpush1.msra.mxu0 0.0
    %315 = vmatprep.subr.mxu0 0.0
    %316 = vmatpush1.msra.mxu0 0.0
    %317 = vmatprep.subr.mxu0 0.0
    %318 = vmatpush1.msra.mxu0 0.0
    %319 = vmatprep.subr.mxu0 0.0
    %320 = vmatpush1.msra.mxu0 0.0
    %321 = vmatprep.subr.mxu0 0.0
    %322 = vmatpush1.msra.mxu0 0.0
    %323 = vmatprep.subr.mxu0 0.0
    %324 = vmatpush1.msra.mxu0 0.0
    %325 = vmatprep.mubr.f32.mxu0 0.0
    %326 = vmatmul.mubr.f32.gmra.mrb[0].mxu0 %v259
    %v327 = vpop.f32.mrb[0].mxu0
    %v328 = vadd.f32 0.0, %v327
    %v329 = vpop.f32.mrb[0].mxu0
    %330 = vdwg.mxu0
    %v332 = vrot.slane %v328, 6
    %v334 = vadd.f32 %v146, %v332
    %v335 = vxor.u32 %v334, 2147483648
    %v336 = vmul.f32 %v335, 1.442695
    %v337 = vpow.pop %v336
    %v338 = vadd.f32 %v337, 1.0
    %v339 = vrcp.pop %v338
    %v340 = vmul.f32 1.0, %v339
    %v341 = vtanh.pop %v334
    %v343 = vrot.slane %v249, 6
    %v345 = vmul.f32 %v340, %v343
    %347 = vrot.lane.b32.xlu0 %v341, 64
    %v348 = vpop.permute.xlu0 %347
    %v350 = vmul.f32 %v340, %v348
    %352 = vrot.lane.b32.xlu0 %v350, 32
    %v353 = vpop.permute.xlu0 %352
    %v355 = vadd.f32 %v345, %v353
    %v356 = vtanh.pop %v355
    %358 = vrot.lane.b32.xlu0 %v356, 64
    %v359 = vpop.permute.xlu0 %358
    %v361 = vmul.f32 %v340, %v359
    %v363 = vrot.slane %v361, 2
    %364 = vrot.lane.b32.xlu0 %v363, 32
    %v365 = vpop.permute.xlu0 %364
    %v366 = vsel %vm72, %v365, 0
    %368 = vmatprep.subr.mxu0 0.0
    %369 = vmatpush1.msra.mxu0 %v154
    %370 = vmatprep.subr.mxu0 0.0
    %371 = vmatpush1.msra.mxu0 %v155
    %372 = vmatprep.subr.mxu0 0.0
    %373 = vmatpush1.msra.mxu0 %v156
    %374 = vmatprep.subr.mxu0 0.0
    %375 = vmatpush1.msra.mxu0 %v157
    %376 = vmatprep.subr.mxu0 0.0
    %377 = vmatpush1.msra.mxu0 0.0
    %378 = vmatprep.subr.mxu0 0.0
    %379 = vmatpush1.msra.mxu0 0.0
    %380 = vmatprep.subr.mxu0 0.0
    %381 = vmatpush1.msra.mxu0 0.0
    %382 = vmatprep.subr.mxu0 0.0
    %383 = vmatpush1.msra.mxu0 0.0
    %384 = vmatprep.subr.mxu0 0.0
    %385 = vmatpush1.msra.mxu0 0.0
    %386 = vmatprep.subr.mxu0 0.0
    %387 = vmatpush1.msra.mxu0 0.0
    %388 = vmatprep.subr.mxu0 0.0
    %389 = vmatpush1.msra.mxu0 0.0
    %390 = vmatprep.subr.mxu0 0.0
    %391 = vmatpush1.msra.mxu0 0.0
    %392 = vmatprep.subr.mxu0 0.0
    %393 = vmatpush1.msra.mxu0 0.0
    %394 = vmatprep.subr.mxu0 0.0
    %395 = vmatpush1.msra.mxu0 0.0
    %396 = vmatprep.subr.mxu0 0.0
    %397 = vmatpush1.msra.mxu0 0.0
    %398 = vmatprep.subr.mxu0 0.0
    %399 = vmatpush1.msra.mxu0 0.0
    %400 = vmatprep.subr.mxu0 0.0
    %401 = vmatpush1.msra.mxu0 0.0
    %402 = vmatprep.subr.mxu0 0.0
    %403 = vmatpush1.msra.mxu0 0.0
    %404 = vmatprep.subr.mxu0 0.0
    %405 = vmatpush1.msra.mxu0 0.0
    %406 = vmatprep.subr.mxu0 0.0
    %407 = vmatpush1.msra.mxu0 0.0
    %408 = vmatprep.subr.mxu0 0.0
    %409 = vmatpush1.msra.mxu0 0.0
    %410 = vmatprep.subr.mxu0 0.0
    %411 = vmatpush1.msra.mxu0 0.0
    %412 = vmatprep.subr.mxu0 0.0
    %413 = vmatpush1.msra.mxu0 0.0
    %414 = vmatprep.subr.mxu0 0.0
    %415 = vmatpush1.msra.mxu0 0.0
    %416 = vmatprep.subr.mxu0 0.0
    %417 = vmatpush1.msra.mxu0 0.0
    %418 = vmatprep.subr.mxu0 0.0
    %419 = vmatpush1.msra.mxu0 0.0
    %420 = vmatprep.subr.mxu0 0.0
    %421 = vmatpush1.msra.mxu0 0.0
    %422 = vmatprep.subr.mxu0 0.0
    %423 = vmatpush1.msra.mxu0 0.0
    %424 = vmatprep.subr.mxu0 0.0
    %425 = vmatpush1.msra.mxu0 0.0
    %426 = vmatprep.subr.mxu0 0.0
    %427 = vmatpush1.msra.mxu0 0.0
    %428 = vmatprep.subr.mxu0 0.0
    %429 = vmatpush1.msra.mxu0 0.0
    %430 = vmatprep.subr.mxu0 0.0
    %431 = vmatpush1.msra.mxu0 0.0
    %432 = vmatprep.mubr.f32.mxu0 0.0
    %433 = vmatmul.mubr.f32.gmra.mrb[0].mxu0 %v366
    %v434 = vpop.f32.mrb[0].mxu0
    %v435 = vadd.f32 0.0, %v434
    %v436 = vpop.f32.mrb[0].mxu0
    %437 = vdwg.mxu0
    %v439 = vrot.slane %v435, 4
    %v441 = vadd.f32 %v146, %v439
    %v442 = vxor.u32 %v441, 2147483648
    %v443 = vmul.f32 %v442, 1.442695
    %v444 = vpow.pop %v443
    %v445 = vadd.f32 %v444, 1.0
    %v446 = vrcp.pop %v445
    %v447 = vmul.f32 1.0, %v446
    %v448 = vtanh.pop %v441
    %v450 = vrot.slane %v355, 6
    %v452 = vmul.f32 %v447, %v450
    %454 = vrot.lane.b32.xlu0 %v448, 64
    %v455 = vpop.permute.xlu0 %454
    %v457 = vmul.f32 %v447, %v455
    %459 = vrot.lane.b32.xlu0 %v457, 32
    %v460 = vpop.permute.xlu0 %459
    %v462 = vadd.f32 %v452, %v460
    %v463 = vtanh.pop %v462
    %465 = vrot.lane.b32.xlu0 %v463, 64
    %v466 = vpop.permute.xlu0 %465
    %v468 = vmul.f32 %v447, %v466
    %v470 = vrot.slane %v468, 4
    %471 = vrot.lane.b32.xlu0 %v470, 32
    %v472 = vpop.permute.xlu0 %471
    %v473 = vsel %vm72, %v472, 0
    %475 = vmatprep.subr.mxu0 0.0
    %476 = vmatpush1.msra.mxu0 %v154
    %477 = vmatprep.subr.mxu0 0.0
    %478 = vmatpush1.msra.mxu0 %v155
    %479 = vmatprep.subr.mxu0 0.0
    %480 = vmatpush1.msra.mxu0 %v156
    %481 = vmatprep.subr.mxu0 0.0
    %482 = vmatpush1.msra.mxu0 %v157
    %483 = vmatprep.subr.mxu0 0.0
    %484 = vmatpush1.msra.mxu0 0.0
    %485 = vmatprep.subr.mxu0 0.0
    %486 = vmatpush1.msra.mxu0 0.0
    %487 = vmatprep.subr.mxu0 0.0
    %488 = vmatpush1.msra.mxu0 0.0
    %489 = vmatprep.subr.mxu0 0.0
    %490 = vmatpush1.msra.mxu0 0.0
    %491 = vmatprep.subr.mxu0 0.0
    %492 = vmatpush1.msra.mxu0 0.0
    %493 = vmatprep.subr.mxu0 0.0
    %494 = vmatpush1.msra.mxu0 0.0
    %495 = vmatprep.subr.mxu0 0.0
    %496 = vmatpush1.msra.mxu0 0.0
    %497 = vmatprep.subr.mxu0 0.0
    %498 = vmatpush1.msra.mxu0 0.0
    %499 = vmatprep.subr.mxu0 0.0
    %500 = vmatpush1.msra.mxu0 0.0
    %501 = vmatprep.subr.mxu0 0.0
    %502 = vmatpush1.msra.mxu0 0.0
    %503 = vmatprep.subr.mxu0 0.0
    %504 = vmatpush1.msra.mxu0 0.0
    %505 = vmatprep.subr.mxu0 0.0
    %506 = vmatpush1.msra.mxu0 0.0
    %507 = vmatprep.subr.mxu0 0.0
    %508 = vmatpush1.msra.mxu0 0.0
    %509 = vmatprep.subr.mxu0 0.0
    %510 = vmatpush1.msra.mxu0 0.0
    %511 = vmatprep.subr.mxu0 0.0
    %512 = vmatpush1.msra.mxu0 0.0
    %513 = vmatprep.subr.mxu0 0.0
    %514 = vmatpush1.msra.mxu0 0.0
    %515 = vmatprep.subr.mxu0 0.0
    %516 = vmatpush1.msra.mxu0 0.0
    %517 = vmatprep.subr.mxu0 0.0
    %518 = vmatpush1.msra.mxu0 0.0
    %519 = vmatprep.subr.mxu0 0.0
    %520 = vmatpush1.msra.mxu0 0.0
    %521 = vmatprep.subr.mxu0 0.0
    %522 = vmatpush1.msra.mxu0 0.0
    %523 = vmatprep.subr.mxu0 0.0
    %524 = vmatpush1.msra.mxu0 0.0
    %525 = vmatprep.subr.mxu0 0.0
    %526 = vmatpush1.msra.mxu0 0.0
    %527 = vmatprep.subr.mxu0 0.0
    %528 = vmatpush1.msra.mxu0 0.0
    %529 = vmatprep.subr.mxu0 0.0
    %530 = vmatpush1.msra.mxu0 0.0
    %531 = vmatprep.subr.mxu0 0.0
    %532 = vmatpush1.msra.mxu0 0.0
    %533 = vmatprep.subr.mxu0 0.0
    %534 = vmatpush1.msra.mxu0 0.0
    %535 = vmatprep.subr.mxu0 0.0
    %536 = vmatpush1.msra.mxu0 0.0
    %537 = vmatprep.subr.mxu0 0.0
    %538 = vmatpush1.msra.mxu0 0.0
    %539 = vmatprep.mubr.f32.mxu0 0.0
    %540 = vmatmul.mubr.f32.gmra.mrb[0].mxu0 %v473
    %v541 = vpop.f32.mrb[0].mxu0
    %v542 = vadd.f32 0.0, %v541
    %v543 = vpop.f32.mrb[0].mxu0
    %544 = vdwg.mxu0
    %v546 = vrot.slane %v542, 2
    %v548 = vadd.f32 %v146, %v546
    %v549 = vxor.u32 %v548, 2147483648
    %v550 = vmul.f32 %v549, 1.442695
    %v551 = vpow.pop %v550
    %v552 = vadd.f32 %v551, 1.0
    %v553 = vrcp.pop %v552
    %v554 = vmul.f32 1.0, %v553
    %v555 = vtanh.pop %v548
    %v557 = vrot.slane %v462, 6
    %v559 = vmul.f32 %v554, %v557
    %561 = vrot.lane.b32.xlu0 %v555, 64
    %v562 = vpop.permute.xlu0 %561
    %v564 = vmul.f32 %v554, %v562
    %566 = vrot.lane.b32.xlu0 %v564, 32
    %v567 = vpop.permute.xlu0 %566
    %v569 = vadd.f32 %v559, %v567
    %v570 = vtanh.pop %v569
    %572 = vrot.lane.b32.xlu0 %v570, 64
    %v573 = vpop.permute.xlu0 %572
    %v575 = vmul.f32 %v554, %v573
    %v577 = vrot.slane %v575, 6
    %578 = vrot.lane.b32.xlu0 %v577, 32
    %v579 = vpop.permute.xlu0 %578
    %v580 = vsel %vm72, %v579, 0
    %582 = vmatprep.subr.mxu0 0.0
    %583 = vmatpush1.msra.mxu0 %v154
    %584 = vmatprep.subr.mxu0 0.0
    %585 = vmatpush1.msra.mxu0 %v155
    %586 = vmatprep.subr.mxu0 0.0
    %587 = vmatpush1.msra.mxu0 %v156
    %588 = vmatprep.subr.mxu0 0.0
    %589 = vmatpush1.msra.mxu0 %v157
    %590 = vmatprep.subr.mxu0 0.0
    %591 = vmatpush1.msra.mxu0 0.0
    %592 = vmatprep.subr.mxu0 0.0
    %593 = vmatpush1.msra.mxu0 0.0
    %594 = vmatprep.subr.mxu0 0.0
    %595 = vmatpush1.msra.mxu0 0.0
    %596 = vmatprep.subr.mxu0 0.0
    %597 = vmatpush1.msra.mxu0 0.0
    %598 = vmatprep.subr.mxu0 0.0
    %599 = vmatpush1.msra.mxu0 0.0
    %600 = vmatprep.subr.mxu0 0.0
    %601 = vmatpush1.msra.mxu0 0.0
    %602 = vmatprep.subr.mxu0 0.0
    %603 = vmatpush1.msra.mxu0 0.0
    %604 = vmatprep.subr.mxu0 0.0
    %605 = vmatpush1.msra.mxu0 0.0
    %606 = vmatprep.subr.mxu0 0.0
    %607 = vmatpush1.msra.mxu0 0.0
    %608 = vmatprep.subr.mxu0 0.0
    %609 = vmatpush1.msra.mxu0 0.0
    %610 = vmatprep.subr.mxu0 0.0
    %611 = vmatpush1.msra.mxu0 0.0
    %612 = vmatprep.subr.mxu0 0.0
    %613 = vmatpush1.msra.mxu0 0.0
    %614 = vmatprep.subr.mxu0 0.0
    %615 = vmatpush1.msra.mxu0 0.0
    %616 = vmatprep.subr.mxu0 0.0
    %617 = vmatpush1.msra.mxu0 0.0
    %618 = vmatprep.subr.mxu0 0.0
    %619 = vmatpush1.msra.mxu0 0.0
    %620 = vmatprep.subr.mxu0 0.0
    %621 = vmatpush1.msra.mxu0 0.0
    %622 = vmatprep.subr.mxu0 0.0
    %623 = vmatpush1.msra.mxu0 0.0
    %624 = vmatprep.subr.mxu0 0.0
    %625 = vmatpush1.msra.mxu0 0.0
    %626 = vmatprep.subr.mxu0 0.0
    %627 = vmatpush1.msra.mxu0 0.0
    %628 = vmatprep.subr.mxu0 0.0
    %629 = vmatpush1.msra.mxu0 0.0
    %630 = vmatprep.subr.mxu0 0.0
    %631 = vmatpush1.msra.mxu0 0.0
    %632 = vmatprep.subr.mxu0 0.0
    %633 = vmatpush1.msra.mxu0 0.0
    %634 = vmatprep.subr.mxu0 0.0
    %635 = vmatpush1.msra.mxu0 0.0
    %636 = vmatprep.subr.mxu0 0.0
    %637 = vmatpush1.msra.mxu0 0.0
    %638 = vmatprep.subr.mxu0 0.0
    %639 = vmatpush1.msra.mxu0 0.0
    %640 = vmatprep.subr.mxu0 0.0
    %641 = vmatpush1.msra.mxu0 0.0
    %642 = vmatprep.subr.mxu0 0.0
    %643 = vmatpush1.msra.mxu0 0.0
    %644 = vmatprep.subr.mxu0 0.0
    %645 = vmatpush1.msra.mxu0 0.0
    %646 = vmatprep.mubr.f32.mxu0 0.0
    %647 = vmatmul.mubr.f32.gmra.mrb[0].mxu0 %v580
    %v648 = vpop.f32.mrb[0].mxu0
    %v649 = vadd.f32 0.0, %v648
    %v650 = vpop.f32.mrb[0].mxu0
    %651 = vdwg.mxu0
    %v652 = vadd.f32 %v151, %v649
    %v653 = vxor.u32 %v652, 2147483648
    %v654 = vmul.f32 %v653, 1.442695
    %v655 = vpow.pop %v654
    %v656 = vadd.f32 %v655, 1.0
    %v657 = vrcp.pop %v656
    %v658 = vmul.f32 1.0, %v657
    %v659 = vtanh.pop %v652
    %v661 = vrot.slane %v569, 6
    %v663 = vmul.f32 %v658, %v661
    %665 = vrot.lane.b32.xlu0 %v659, 64
    %v666 = vpop.permute.xlu0 %665
    %v668 = vmul.f32 %v658, %v666
    %670 = vrot.lane.b32.xlu0 %v668, 32
    %v671 = vpop.permute.xlu0 %670
    %v673 = vadd.f32 %v663, %v671
    %v674 = vtanh.pop %v673
    %676 = vrot.lane.b32.xlu0 %v674, 64
    %v677 = vpop.permute.xlu0 %676
    %v679 = vmul.f32 %v658, %v677
    %681 = vrot.lane.b32.xlu0 %v679, 32
    %v682 = vpop.permute.xlu0 %681
    %v683 = vsel %vm72, %v682, 0
    %685 = vmatprep.subr.mxu0 0.0
    %686 = vmatpush1.msra.mxu0 %v154
    %687 = vmatprep.subr.mxu0 0.0
    %688 = vmatpush1.msra.mxu0 %v155
    %689 = vmatprep.subr.mxu0 0.0
    %690 = vmatpush1.msra.mxu0 %v156
    %691 = vmatprep.subr.mxu0 0.0
    %692 = vmatpush1.msra.mxu0 %v157
    %693 = vmatprep.subr.mxu0 0.0
    %694 = vmatpush1.msra.mxu0 0.0
    %695 = vmatprep.subr.mxu0 0.0
    %696 = vmatpush1.msra.mxu0 0.0
    %697 = vmatprep.subr.mxu0 0.0
    %698 = vmatpush1.msra.mxu0 0.0
    %699 = vmatprep.subr.mxu0 0.0
    %700 = vmatpush1.msra.mxu0 0.0
    %701 = vmatprep.subr.mxu0 0.0
    %702 = vmatpush1.msra.mxu0 0.0
    %703 = vmatprep.subr.mxu0 0.0
    %704 = vmatpush1.msra.mxu0 0.0
    %705 = vmatprep.subr.mxu0 0.0
    %706 = vmatpush1.msra.mxu0 0.0
    %707 = vmatprep.subr.mxu0 0.0
    %708 = vmatpush1.msra.mxu0 0.0
    %709 = vmatprep.subr.mxu0 0.0
    %710 = vmatpush1.msra.mxu0 0.0
    %711 = vmatprep.subr.mxu0 0.0
    %712 = vmatpush1.msra.mxu0 0.0
    %713 = vmatprep.subr.mxu0 0.0
    %714 = vmatpush1.msra.mxu0 0.0
    %715 = vmatprep.subr.mxu0 0.0
    %716 = vmatpush1.msra.mxu0 0.0
    %717 = vmatprep.subr.mxu0 0.0
    %718 = vmatpush1.msra.mxu0 0.0
    %719 = vmatprep.subr.mxu0 0.0
    %720 = vmatpush1.msra.mxu0 0.0
    %721 = vmatprep.subr.mxu0 0.0
    %722 = vmatpush1.msra.mxu0 0.0
    %723 = vmatprep.subr.mxu0 0.0
    %724 = vmatpush1.msra.mxu0 0.0
    %725 = vmatprep.subr.mxu0 0.0
    %726 = vmatpush1.msra.mxu0 0.0
    %727 = vmatprep.subr.mxu0 0.0
    %728 = vmatpush1.msra.mxu0 0.0
    %729 = vmatprep.subr.mxu0 0.0
    %730 = vmatpush1.msra.mxu0 0.0
    %731 = vmatprep.subr.mxu0 0.0
    %732 = vmatpush1.msra.mxu0 0.0
    %733 = vmatprep.subr.mxu0 0.0
    %734 = vmatpush1.msra.mxu0 0.0
    %735 = vmatprep.subr.mxu0 0.0
    %736 = vmatpush1.msra.mxu0 0.0
    %737 = vmatprep.subr.mxu0 0.0
    %738 = vmatpush1.msra.mxu0 0.0
    %739 = vmatprep.subr.mxu0 0.0
    %740 = vmatpush1.msra.mxu0 0.0
    %741 = vmatprep.subr.mxu0 0.0
    %742 = vmatpush1.msra.mxu0 0.0
    %743 = vmatprep.subr.mxu0 0.0
    %744 = vmatpush1.msra.mxu0 0.0
    %745 = vmatprep.subr.mxu0 0.0
    %746 = vmatpush1.msra.mxu0 0.0
    %747 = vmatprep.subr.mxu0 0.0
    %748 = vmatpush1.msra.mxu0 0.0
    %749 = vmatprep.mubr.f32.mxu0 0.0
    %750 = vmatmul.mubr.f32.gmra.mrb[0].mxu0 %v683
    %v751 = vpop.f32.mrb[0].mxu0
    %v752 = vadd.f32 0.0, %v751
    %v753 = vpop.f32.mrb[0].mxu0
    %754 = vdwg.mxu0
    %v756 = vrot.slane %v752, 6
    %v758 = vadd.f32 %v151, %v756
    %v759 = vxor.u32 %v758, 2147483648
    %v760 = vmul.f32 %v759, 1.442695
    %v761 = vpow.pop %v760
    %v762 = vadd.f32 %v761, 1.0
    %v763 = vrcp.pop %v762
    %v764 = vmul.f32 1.0, %v763
    %v765 = vtanh.pop %v758
    %v767 = vrot.slane %v673, 6
    %v769 = vmul.f32 %v764, %v767
    %771 = vrot.lane.b32.xlu0 %v765, 64
    %v772 = vpop.permute.xlu0 %771
    %v774 = vmul.f32 %v764, %v772
    %776 = vrot.lane.b32.xlu0 %v774, 32
    %v777 = vpop.permute.xlu0 %776
    %v779 = vadd.f32 %v769, %v777
    %v780 = vtanh.pop %v779
    %782 = vrot.lane.b32.xlu0 %v780, 64
    %v783 = vpop.permute.xlu0 %782
    %v785 = vmul.f32 %v764, %v783
    %v787 = vrot.slane %v785, 2
    %788 = vrot.lane.b32.xlu0 %v787, 32
    %v789 = vpop.permute.xlu0 %788
    %v790 = vsel %vm72, %v789, 0
    %792 = vmatprep.subr.mxu0 0.0
    %793 = vmatpush1.msra.mxu0 %v154
    %794 = vmatprep.subr.mxu0 0.0
    %795 = vmatpush1.msra.mxu0 %v155
    %796 = vmatprep.subr.mxu0 0.0
    %797 = vmatpush1.msra.mxu0 %v156
    %798 = vmatprep.subr.mxu0 0.0
    %799 = vmatpush1.msra.mxu0 %v157
    %800 = vmatprep.subr.mxu0 0.0
    %801 = vmatpush1.msra.mxu0 0.0
    %802 = vmatprep.subr.mxu0 0.0
    %803 = vmatpush1.msra.mxu0 0.0
    %804 = vmatprep.subr.mxu0 0.0
    %805 = vmatpush1.msra.mxu0 0.0
    %806 = vmatprep.subr.mxu0 0.0
    %807 = vmatpush1.msra.mxu0 0.0
    %808 = vmatprep.subr.mxu0 0.0
    %809 = vmatpush1.msra.mxu0 0.0
    %810 = vmatprep.subr.mxu0 0.0
    %811 = vmatpush1.msra.mxu0 0.0
    %812 = vmatprep.subr.mxu0 0.0
    %813 = vmatpush1.msra.mxu0 0.0
    %814 = vmatprep.subr.mxu0 0.0
    %815 = vmatpush1.msra.mxu0 0.0
    %816 = vmatprep.subr.mxu0 0.0
    %817 = vmatpush1.msra.mxu0 0.0
    %818 = vmatprep.subr.mxu0 0.0
    %819 = vmatpush1.msra.mxu0 0.0
    %820 = vmatprep.subr.mxu0 0.0
    %821 = vmatpush1.msra.mxu0 0.0
    %822 = vmatprep.subr.mxu0 0.0
    %823 = vmatpush1.msra.mxu0 0.0
    %824 = vmatprep.subr.mxu0 0.0
    %825 = vmatpush1.msra.mxu0 0.0
    %826 = vmatprep.subr.mxu0 0.0
    %827 = vmatpush1.msra.mxu0 0.0
    %828 = vmatprep.subr.mxu0 0.0
    %829 = vmatpush1.msra.mxu0 0.0
    %830 = vmatprep.subr.mxu0 0.0
    %831 = vmatpush1.msra.mxu0 0.0
    %832 = vmatprep.subr.mxu0 0.0
    %833 = vmatpush1.msra.mxu0 0.0
    %834 = vmatprep.subr.mxu0 0.0
    %835 = vmatpush1.msra.mxu0 0.0
    %836 = vmatprep.subr.mxu0 0.0
    %837 = vmatpush1.msra.mxu0 0.0
    %838 = vmatprep.subr.mxu0 0.0
    %839 = vmatpush1.msra.mxu0 0.0
    %840 = vmatprep.subr.mxu0 0.0
    %841 = vmatpush1.msra.mxu0 0.0
    %842 = vmatprep.subr.mxu0 0.0
    %843 = vmatpush1.msra.mxu0 0.0
    %844 = vmatprep.subr.mxu0 0.0
    %845 = vmatpush1.msra.mxu0 0.0
    %846 = vmatprep.subr.mxu0 0.0
    %847 = vmatpush1.msra.mxu0 0.0
    %848 = vmatprep.subr.mxu0 0.0
    %849 = vmatpush1.msra.mxu0 0.0
    %850 = vmatprep.subr.mxu0 0.0
    %851 = vmatpush1.msra.mxu0 0.0
    %852 = vmatprep.subr.mxu0 0.0
    %853 = vmatpush1.msra.mxu0 0.0
    %854 = vmatprep.subr.mxu0 0.0
    %855 = vmatpush1.msra.mxu0 0.0
    %856 = vmatprep.mubr.f32.mxu0 0.0
    %857 = vmatmul.mubr.f32.gmra.mrb[0].mxu0 %v790
    %v858 = vpop.f32.mrb[0].mxu0
    %v859 = vadd.f32 0.0, %v858
    %v860 = vpop.f32.mrb[0].mxu0
    %861 = vdwg.mxu0
    %v863 = vrot.slane %v859, 4
    %v865 = vadd.f32 %v151, %v863
    %v866 = vxor.u32 %v865, 2147483648
    %v867 = vmul.f32 %v866, 1.442695
    %v868 = vpow.pop %v867
    %v869 = vadd.f32 %v868, 1.0
    %v870 = vrcp.pop %v869
    %v871 = vmul.f32 1.0, %v870
    %v872 = vtanh.pop %v865
    %v874 = vrot.slane %v779, 6
    %v876 = vmul.f32 %v871, %v874
    %878 = vrot.lane.b32.xlu0 %v872, 64
    %v879 = vpop.permute.xlu0 %878
    %v881 = vmul.f32 %v871, %v879
    %883 = vrot.lane.b32.xlu0 %v881, 32
    %v884 = vpop.permute.xlu0 %883
    %v886 = vadd.f32 %v876, %v884
    %v887 = vtanh.pop %v886
    %889 = vrot.lane.b32.xlu0 %v887, 64
    %v890 = vpop.permute.xlu0 %889
    %v892 = vmul.f32 %v871, %v890
    %v894 = vrot.slane %v892, 4
    %895 = vrot.lane.b32.xlu0 %v894, 32
    %v896 = vpop.permute.xlu0 %895
    %v897 = vsel %vm72, %v896, 0
    %899 = vmatprep.subr.mxu0 0.0
    %900 = vmatpush1.msra.mxu0 %v154
    %901 = vmatprep.subr.mxu0 0.0
    %902 = vmatpush1.msra.mxu0 %v155
    %903 = vmatprep.subr.mxu0 0.0
    %904 = vmatpush1.msra.mxu0 %v156
    %905 = vmatprep.subr.mxu0 0.0
    %906 = vmatpush1.msra.mxu0 %v157
    %907 = vmatprep.subr.mxu0 0.0
    %908 = vmatpush1.msra.mxu0 0.0
    %909 = vmatprep.subr.mxu0 0.0
    %910 = vmatpush1.msra.mxu0 0.0
    %911 = vmatprep.subr.mxu0 0.0
    %912 = vmatpush1.msra.mxu0 0.0
    %913 = vmatprep.subr.mxu0 0.0
    %914 = vmatpush1.msra.mxu0 0.0
    %915 = vmatprep.subr.mxu0 0.0
    %916 = vmatpush1.msra.mxu0 0.0
    %917 = vmatprep.subr.mxu0 0.0
    %918 = vmatpush1.msra.mxu0 0.0
    %919 = vmatprep.subr.mxu0 0.0
    %920 = vmatpush1.msra.mxu0 0.0
    %921 = vmatprep.subr.mxu0 0.0
    %922 = vmatpush1.msra.mxu0 0.0
    %923 = vmatprep.subr.mxu0 0.0
    %924 = vmatpush1.msra.mxu0 0.0
    %925 = vmatprep.subr.mxu0 0.0
    %926 = vmatpush1.msra.mxu0 0.0
    %927 = vmatprep.subr.mxu0 0.0
    %928 = vmatpush1.msra.mxu0 0.0
    %929 = vmatprep.subr.mxu0 0.0
    %930 = vmatpush1.msra.mxu0 0.0
    %931 = vmatprep.subr.mxu0 0.0
    %932 = vmatpush1.msra.mxu0 0.0
    %933 = vmatprep.subr.mxu0 0.0
    %934 = vmatpush1.msra.mxu0 0.0
    %935 = vmatprep.subr.mxu0 0.0
    %936 = vmatpush1.msra.mxu0 0.0
    %937 = vmatprep.subr.mxu0 0.0
    %938 = vmatpush1.msra.mxu0 0.0
    %939 = vmatprep.subr.mxu0 0.0
    %940 = vmatpush1.msra.mxu0 0.0
    %941 = vmatprep.subr.mxu0 0.0
    %942 = vmatpush1.msra.mxu0 0.0
    %943 = vmatprep.subr.mxu0 0.0
    %944 = vmatpush1.msra.mxu0 0.0
    %945 = vmatprep.subr.mxu0 0.0
    %946 = vmatpush1.msra.mxu0 0.0
    %947 = vmatprep.subr.mxu0 0.0
    %948 = vmatpush1.msra.mxu0 0.0
    %949 = vmatprep.subr.mxu0 0.0
    %950 = vmatpush1.msra.mxu0 0.0
    %951 = vmatprep.subr.mxu0 0.0
    %952 = vmatpush1.msra.mxu0 0.0
    %953 = vmatprep.subr.mxu0 0.0
    %954 = vmatpush1.msra.mxu0 0.0
    %955 = vmatprep.subr.mxu0 0.0
    %956 = vmatpush1.msra.mxu0 0.0
    %957 = vmatprep.subr.mxu0 0.0
    %958 = vmatpush1.msra.mxu0 0.0
    %959 = vmatprep.subr.mxu0 0.0
    %960 = vmatpush1.msra.mxu0 0.0
    %961 = vmatprep.subr.mxu0 0.0
    %962 = vmatpush1.msra.mxu0 0.0
    %963 = vmatprep.mubr.f32.mxu0 0.0
    %964 = vmatmul.mubr.f32.gmra.mrb[0].mxu0 %v897
    %v965 = vpop.f32.mrb[0].mxu0
    %v966 = vadd.f32 0.0, %v965
    %v967 = vpop.f32.mrb[0].mxu0
    %968 = vdwg.mxu0
    %v970 = vrot.slane %v966, 2
    %v972 = vadd.f32 %v151, %v970
    %v973 = vxor.u32 %v972, 2147483648
    %v974 = vmul.f32 %v973, 1.442695
    %v975 = vpow.pop %v974
    %v976 = vadd.f32 %v975, 1.0
    %v977 = vrcp.pop %v976
    %v978 = vmul.f32 1.0, %v977
    %v979 = vtanh.pop %v972
    %v981 = vrot.slane %v886, 6
    %v983 = vmul.f32 %v978, %v981
    %985 = vrot.lane.b32.xlu0 %v979, 64
    %v986 = vpop.permute.xlu0 %985
    %v988 = vmul.f32 %v978, %v986
    %990 = vrot.lane.b32.xlu0 %v988, 32
    %v991 = vpop.permute.xlu0 %990
    %v993 = vadd.f32 %v983, %v991
    %v994 = vtanh.pop %v993
    %996 = vrot.lane.b32.xlu0 %v994, 64
    %v997 = vpop.permute.xlu0 %996
    %v999 = vmul.f32 %v978, %v997
    %vm1000 = vcmask 1041408
    %v1001 = vsel %vm1000, %v255, %v361
    %vm1002 = vcmask 1043456
    %v1003 = vsel %vm1002, %v1001, %v468
    %vm1004 = vcmask 1045504
    %v1005 = vsel %vm1004, %v1003, %v575
    %v1006 = vsel %vm1000, %v679, %v785
    %v1007 = vsel %vm1002, %v1006, %v892
    %v1008 = vsel %vm1004, %v1007, %v999
    %s1009 = scalar_lea.vmem [#allocation5], 32
    %v1010 = vld [vmem:[%s1009] sm:$0xff]
    %v1011 = vld [vmem:[%s1009 + $0x8] sm:$0xff]
    %v1012 = vld [vmem:[%s1009 + $0x10] sm:$0xff]
    %v1013 = vld [vmem:[%s1009 + $0x18] sm:$0xff]
    %s1014 = scalar_lea.vmem %s3, 1
    %v1015 = vld [vmem:[%s1014] sm:$0x1]
    %v1017 = vlaneseq
    %v1018 = vshrl.u32 %v1017, 7
    %v1019 = vsub.s32 0, %v1018
    %v1020 = vrot.slane %v1015, %v1019
    %1024 = vrot.lane.b32.xlu0 %v1005, 32
    %v1025 = vpop.permute.xlu0 %1024
    %1026 = vrot.lane.b32.xlu0 %v1008, 32
    %v1027 = vpop.permute.xlu0 %1026
    %v1028 = vsel %vm72, %v1025, 0
    %v1030 = vsel %vm72, %v1027, 0
    %1032 = vmatprep.subr.mxu0 0.0
    %1033 = vmatpush1.msra.mxu0 %v1010
    %1034 = vmatprep.subr.mxu0 0.0
    %1035 = vmatpush1.msra.mxu0 %v1011
    %1036 = vmatprep.subr.mxu0 0.0
    %1037 = vmatpush1.msra.mxu0 %v1012
    %1038 = vmatprep.subr.mxu0 0.0
    %1039 = vmatpush1.msra.mxu0 %v1013
    %1040 = vmatprep.subr.mxu0 0.0
    %1041 = vmatpush1.msra.mxu0 0.0
    %1042 = vmatprep.subr.mxu0 0.0
    %1043 = vmatpush1.msra.mxu0 0.0
    %1044 = vmatprep.subr.mxu0 0.0
    %1045 = vmatpush1.msra.mxu0 0.0
    %1046 = vmatprep.subr.mxu0 0.0
    %1047 = vmatpush1.msra.mxu0 0.0
    %1048 = vmatprep.subr.mxu0 0.0
    %1049 = vmatpush1.msra.mxu0 0.0
    %1050 = vmatprep.subr.mxu0 0.0
    %1051 = vmatpush1.msra.mxu0 0.0
    %1052 = vmatprep.subr.mxu0 0.0
    %1053 = vmatpush1.msra.mxu0 0.0
    %1054 = vmatprep.subr.mxu0 0.0
    %1055 = vmatpush1.msra.mxu0 0.0
    %1056 = vmatprep.subr.mxu0 0.0
    %1057 = vmatpush1.msra.mxu0 0.0
    %1058 = vmatprep.subr.mxu0 0.0
    %1059 = vmatpush1.msra.mxu0 0.0
    %1060 = vmatprep.subr.mxu0 0.0
    %1061 = vmatpush1.msra.mxu0 0.0
    %1062 = vmatprep.subr.mxu0 0.0
    %1063 = vmatpush1.msra.mxu0 0.0
    %1064 = vmatprep.subr.mxu0 0.0
    %1065 = vmatpush1.msra.mxu0 0.0
    %1066 = vmatprep.subr.mxu0 0.0
    %1067 = vmatpush1.msra.mxu0 0.0
    %1068 = vmatprep.subr.mxu0 0.0
    %1069 = vmatpush1.msra.mxu0 0.0
    %1070 = vmatprep.subr.mxu0 0.0
    %1071 = vmatpush1.msra.mxu0 0.0
    %1072 = vmatprep.subr.mxu0 0.0
    %1073 = vmatpush1.msra.mxu0 0.0
    %1074 = vmatprep.subr.mxu0 0.0
    %1075 = vmatpush1.msra.mxu0 0.0
    %1076 = vmatprep.subr.mxu0 0.0
    %1077 = vmatpush1.msra.mxu0 0.0
    %1078 = vmatprep.subr.mxu0 0.0
    %1079 = vmatpush1.msra.mxu0 0.0
    %1080 = vmatprep.subr.mxu0 0.0
    %1081 = vmatpush1.msra.mxu0 0.0
    %1082 = vmatprep.subr.mxu0 0.0
    %1083 = vmatpush1.msra.mxu0 0.0
    %1084 = vmatprep.subr.mxu0 0.0
    %1085 = vmatpush1.msra.mxu0 0.0
    %1086 = vmatprep.subr.mxu0 0.0
    %1087 = vmatpush1.msra.mxu0 0.0
    %1088 = vmatprep.subr.mxu0 0.0
    %1089 = vmatpush1.msra.mxu0 0.0
    %1090 = vmatprep.subr.mxu0 0.0
    %1091 = vmatpush1.msra.mxu0 0.0
    %1092 = vmatprep.subr.mxu0 0.0
    %1093 = vmatpush1.msra.mxu0 0.0
    %1094 = vmatprep.subr.mxu0 0.0
    %1095 = vmatpush1.msra.mxu0 0.0
    %1096 = vmatprep.mubr.f32.mxu0 0.0
    %1097 = vmatmul.mubr.f32.gmra.mrb[0].mxu0 %v1028
    %v1098 = vpop.f32.mrb[0].mxu0
    %v1099 = vadd.f32 %v1020, %v1098
    %v1100 = vpop.f32.mrb[0].mxu0
    %1101 = vmatprep.mubr.f32.mxu0 0.0
    %1102 = vmatmul.mubr.f32.gmra.mrb[0].mxu0 %v1030
    %v1103 = vpop.f32.mrb[0].mxu0
    %v1104 = vadd.f32 %v1020, %v1103
    %v1105 = vpop.f32.mrb[0].mxu0
    %1106 = vdwg.mxu0
    %s1107 = scalar_lea.vmem [#allocation7], 32
    %v1108 = vld [vmem:[%s1107] sm:$0xff]
    %v1109 = vld [vmem:[%s1107 + $0x8] sm:$0xff]
    %v1110 = vld [vmem:[%s1107 + $0x10] sm:$0xff]
    %v1111 = vld [vmem:[%s1107 + $0x18] sm:$0xff]
    %1112 = vmatprep.subr.mxu0 0.0
    %1113 = vmatpush1.msra.mxu0 %v1108
    %1114 = vmatprep.subr.mxu0 0.0
    %1115 = vmatpush1.msra.mxu0 %v1109
    %1116 = vmatprep.subr.mxu0 0.0
    %1117 = vmatpush1.msra.mxu0 %v1110
    %1118 = vmatprep.subr.mxu0 0.0
    %1119 = vmatpush1.msra.mxu0 %v1111
    %1120 = vmatprep.subr.mxu0 0.0
    %1121 = vmatpush1.msra.mxu0 0.0
    %1122 = vmatprep.subr.mxu0 0.0
    %1123 = vmatpush1.msra.mxu0 0.0
    %1124 = vmatprep.subr.mxu0 0.0
    %1125 = vmatpush1.msra.mxu0 0.0
    %1126 = vmatprep.subr.mxu0 0.0
    %1127 = vmatpush1.msra.mxu0 0.0
    %1128 = vmatprep.subr.mxu0 0.0
    %1129 = vmatpush1.msra.mxu0 0.0
    %1130 = vmatprep.subr.mxu0 0.0
    %1131 = vmatpush1.msra.mxu0 0.0
    %1132 = vmatprep.subr.mxu0 0.0
    %1133 = vmatpush1.msra.mxu0 0.0
    %1134 = vmatprep.subr.mxu0 0.0
    %1135 = vmatpush1.msra.mxu0 0.0
    %1136 = vmatprep.subr.mxu0 0.0
    %1137 = vmatpush1.msra.mxu0 0.0
    %1138 = vmatprep.subr.mxu0 0.0
    %1139 = vmatpush1.msra.mxu0 0.0
    %1140 = vmatprep.subr.mxu0 0.0
    %1141 = vmatpush1.msra.mxu0 0.0
    %1142 = vmatprep.subr.mxu0 0.0
    %1143 = vmatpush1.msra.mxu0 0.0
    %1144 = vmatprep.subr.mxu0 0.0
    %1145 = vmatpush1.msra.mxu0 0.0
    %1146 = vmatprep.subr.mxu0 0.0
    %1147 = vmatpush1.msra.mxu0 0.0
    %1148 = vmatprep.subr.mxu0 0.0
    %1149 = vmatpush1.msra.mxu0 0.0
    %1150 = vmatprep.subr.mxu0 0.0
    %1151 = vmatpush1.msra.mxu0 0.0
    %1152 = vmatprep.subr.mxu0 0.0
    %1153 = vmatpush1.msra.mxu0 0.0
    %1154 = vmatprep.subr.mxu0 0.0
    %1155 = vmatpush1.msra.mxu0 0.0
    %1156 = vmatprep.subr.mxu0 0.0
    %1157 = vmatpush1.msra.mxu0 0.0
    %1158 = vmatprep.subr.mxu0 0.0
    %1159 = vmatpush1.msra.mxu0 0.0
    %1160 = vmatprep.subr.mxu0 0.0
    %1161 = vmatpush1.msra.mxu0 0.0
    %1162 = vmatprep.subr.mxu0 0.0
    %1163 = vmatpush1.msra.mxu0 0.0
    %1164 = vmatprep.subr.mxu0 0.0
    %1165 = vmatpush1.msra.mxu0 0.0
    %1166 = vmatprep.subr.mxu0 0.0
    %1167 = vmatpush1.msra.mxu0 0.0
    %1168 = vmatprep.subr.mxu0 0.0
    %1169 = vmatpush1.msra.mxu0 0.0
    %1170 = vmatprep.subr.mxu0 0.0
    %1171 = vmatpush1.msra.mxu0 0.0
    %1172 = vmatprep.subr.mxu0 0.0
    %1173 = vmatpush1.msra.mxu0 0.0
    %1174 = vmatprep.subr.mxu0 0.0
    %1175 = vmatpush1.msra.mxu0 0.0
    %1176 = vmatprep.mubr.f32.mxu0 0.0
    %1177 = vmatmul.mubr.f32.gmra.mrb[0].mxu0 %v159
    %v1178 = vpop.f32.mrb[0].mxu0
    %v1179 = vadd.f32 0.0, %v1178
    %v1180 = vpop.f32.mrb[0].mxu0
    %1181 = vdwg.mxu0
    %v1182 = vadd.f32 %v1099, %v1179
    %v1183 = vxor.u32 %v1182, 2147483648
    %v1184 = vmul.f32 %v1183, 1.442695
    %v1185 = vpow.pop %v1184
    %v1186 = vadd.f32 %v1185, 1.0
    %v1187 = vrcp.pop %v1186
    %v1188 = vmul.f32 1.0, %v1187
    %v1189 = vtanh.pop %v1182
    %v1190 = vmul.f32 %v1188, 0.0
    %1192 = vrot.lane.b32.xlu0 %v1189, 64
    %v1193 = vpop.permute.xlu0 %1192
    %v1195 = vmul.f32 %v1188, %v1193
    %1197 = vrot.lane.b32.xlu0 %v1195, 32
    %v1198 = vpop.permute.xlu0 %1197
    %v1200 = vadd.f32 %v1190, %v1198
    %v1201 = vtanh.pop %v1200
    %1203 = vrot.lane.b32.xlu0 %v1201, 64
    %v1204 = vpop.permute.xlu0 %1203
    %v1206 = vmul.f32 %v1188, %v1204
    %1208 = vrot.lane.b32.xlu0 %v1206, 32
    %v1209 = vpop.permute.xlu0 %1208
    %v1210 = vsel %vm72, %v1209, 0
    %1212 = vmatprep.subr.mxu0 0.0
    %1213 = vmatpush1.msra.mxu0 %v1108
    %1214 = vmatprep.subr.mxu0 0.0
    %1215 = vmatpush1.msra.mxu0 %v1109
    %1216 = vmatprep.subr.mxu0 0.0
    %1217 = vmatpush1.msra.mxu0 %v1110
    %1218 = vmatprep.subr.mxu0 0.0
    %1219 = vmatpush1.msra.mxu0 %v1111
    %1220 = vmatprep.subr.mxu0 0.0
    %1221 = vmatpush1.msra.mxu0 0.0
    %1222 = vmatprep.subr.mxu0 0.0
    %1223 = vmatpush1.msra.mxu0 0.0
    %1224 = vmatprep.subr.mxu0 0.0
    %1225 = vmatpush1.msra.mxu0 0.0
    %1226 = vmatprep.subr.mxu0 0.0
    %1227 = vmatpush1.msra.mxu0 0.0
    %1228 = vmatprep.subr.mxu0 0.0
    %1229 = vmatpush1.msra.mxu0 0.0
    %1230 = vmatprep.subr.mxu0 0.0
    %1231 = vmatpush1.msra.mxu0 0.0
    %1232 = vmatprep.subr.mxu0 0.0
    %1233 = vmatpush1.msra.mxu0 0.0
    %1234 = vmatprep.subr.mxu0 0.0
    %1235 = vmatpush1.msra.mxu0 0.0
    %1236 = vmatprep.subr.mxu0 0.0
    %1237 = vmatpush1.msra.mxu0 0.0
    %1238 = vmatprep.subr.mxu0 0.0
    %1239 = vmatpush1.msra.mxu0 0.0
    %1240 = vmatprep.subr.mxu0 0.0
    %1241 = vmatpush1.msra.mxu0 0.0
    %1242 = vmatprep.subr.mxu0 0.0
    %1243 = vmatpush1.msra.mxu0 0.0
    %1244 = vmatprep.subr.mxu0 0.0
    %1245 = vmatpush1.msra.mxu0 0.0
    %1246 = vmatprep.subr.mxu0 0.0
    %1247 = vmatpush1.msra.mxu0 0.0
    %1248 = vmatprep.subr.mxu0 0.0
    %1249 = vmatpush1.msra.mxu0 0.0
    %1250 = vmatprep.subr.mxu0 0.0
    %1251 = vmatpush1.msra.mxu0 0.0
    %1252 = vmatprep.subr.mxu0 0.0
    %1253 = vmatpush1.msra.mxu0 0.0
    %1254 = vmatprep.subr.mxu0 0.0
    %1255 = vmatpush1.msra.mxu0 0.0
    %1256 = vmatprep.subr.mxu0 0.0
    %1257 = vmatpush1.msra.mxu0 0.0
    %1258 = vmatprep.subr.mxu0 0.0
    %1259 = vmatpush1.msra.mxu0 0.0
    %1260 = vmatprep.subr.mxu0 0.0
    %1261 = vmatpush1.msra.mxu0 0.0
    %1262 = vmatprep.subr.mxu0 0.0
    %1263 = vmatpush1.msra.mxu0 0.0
    %1264 = vmatprep.subr.mxu0 0.0
    %1265 = vmatpush1.msra.mxu0 0.0
    %1266 = vmatprep.subr.mxu0 0.0
    %1267 = vmatpush1.msra.mxu0 0.0
    %1268 = vmatprep.subr.mxu0 0.0
    %1269 = vmatpush1.msra.mxu0 0.0
    %1270 = vmatprep.subr.mxu0 0.0
    %1271 = vmatpush1.msra.mxu0 0.0
    %1272 = vmatprep.subr.mxu0 0.0
    %1273 = vmatpush1.msra.mxu0 0.0
    %1274 = vmatprep.subr.mxu0 0.0
    %1275 = vmatpush1.msra.mxu0 0.0
    %1276 = vmatprep.mubr.f32.mxu0 0.0
    %1277 = vmatmul.mubr.f32.gmra.mrb[0].mxu0 %v1210
    %v1278 = vpop.f32.mrb[0].mxu0
    %v1279 = vadd.f32 0.0, %v1278
    %v1280 = vpop.f32.mrb[0].mxu0
    %1281 = vdwg.mxu0
    %v1283 = vrot.slane %v1279, 6
    %v1285 = vadd.f32 %v1099, %v1283
    %v1286 = vxor.u32 %v1285, 2147483648
    %v1287 = vmul.f32 %v1286, 1.442695
    %v1288 = vpow.pop %v1287
    %v1289 = vadd.f32 %v1288, 1.0
    %v1290 = vrcp.pop %v1289
    %v1291 = vmul.f32 1.0, %v1290
    %v1292 = vtanh.pop %v1285
    %v1294 = vrot.slane %v1200, 6
    %v1296 = vmul.f32 %v1291, %v1294
    %1298 = vrot.lane.b32.xlu0 %v1292, 64
    %v1299 = vpop.permute.xlu0 %1298
    %v1301 = vmul.f32 %v1291, %v1299
    %1303 = vrot.lane.b32.xlu0 %v1301, 32
    %v1304 = vpop.permute.xlu0 %1303
    %v1306 = vadd.f32 %v1296, %v1304
    %v1307 = vtanh.pop %v1306
    %1309 = vrot.lane.b32.xlu0 %v1307, 64
    %v1310 = vpop.permute.xlu0 %1309
    %v1312 = vmul.f32 %v1291, %v1310
    %v1314 = vrot.slane %v1312, 2
    %1315 = vrot.lane.b32.xlu0 %v1314, 32
    %v1316 = vpop.permute.xlu0 %1315
    %v1317 = vsel %vm72, %v1316, 0
    %1319 = vmatprep.subr.mxu0 0.0
    %1320 = vmatpush1.msra.mxu0 %v1108
    %1321 = vmatprep.subr.mxu0 0.0
    %1322 = vmatpush1.msra.mxu0 %v1109
    %1323 = vmatprep.subr.mxu0 0.0
    %1324 = vmatpush1.msra.mxu0 %v1110
    %1325 = vmatprep.subr.mxu0 0.0
    %1326 = vmatpush1.msra.mxu0 %v1111
    %1327 = vmatprep.subr.mxu0 0.0
    %1328 = vmatpush1.msra.mxu0 0.0
    %1329 = vmatprep.subr.mxu0 0.0
    %1330 = vmatpush1.msra.mxu0 0.0
    %1331 = vmatprep.subr.mxu0 0.0
    %1332 = vmatpush1.msra.mxu0 0.0
    %1333 = vmatprep.subr.mxu0 0.0
    %1334 = vmatpush1.msra.mxu0 0.0
    %1335 = vmatprep.subr.mxu0 0.0
    %1336 = vmatpush1.msra.mxu0 0.0
    %1337 = vmatprep.subr.mxu0 0.0
    %1338 = vmatpush1.msra.mxu0 0.0
    %1339 = vmatprep.subr.mxu0 0.0
    %1340 = vmatpush1.msra.mxu0 0.0
    %1341 = vmatprep.subr.mxu0 0.0
    %1342 = vmatpush1.msra.mxu0 0.0
    %1343 = vmatprep.subr.mxu0 0.0
    %1344 = vmatpush1.msra.mxu0 0.0
    %1345 = vmatprep.subr.mxu0 0.0
    %1346 = vmatpush1.msra.mxu0 0.0
    %1347 = vmatprep.subr.mxu0 0.0
    %1348 = vmatpush1.msra.mxu0 0.0
    %1349 = vmatprep.subr.mxu0 0.0
    %1350 = vmatpush1.msra.mxu0 0.0
    %1351 = vmatprep.subr.mxu0 0.0
    %1352 = vmatpush1.msra.mxu0 0.0
    %1353 = vmatprep.subr.mxu0 0.0
    %1354 = vmatpush1.msra.mxu0 0.0
    %1355 = vmatprep.subr.mxu0 0.0
    %1356 = vmatpush1.msra.mxu0 0.0
    %1357 = vmatprep.subr.mxu0 0.0
    %1358 = vmatpush1.msra.mxu0 0.0
    %1359 = vmatprep.subr.mxu0 0.0
    %1360 = vmatpush1.msra.mxu0 0.0
    %1361 = vmatprep.subr.mxu0 0.0
    %1362 = vmatpush1.msra.mxu0 0.0
    %1363 = vmatprep.subr.mxu0 0.0
    %1364 = vmatpush1.msra.mxu0 0.0
    %1365 = vmatprep.subr.mxu0 0.0
    %1366 = vmatpush1.msra.mxu0 0.0
    %1367 = vmatprep.subr.mxu0 0.0
    %1368 = vmatpush1.msra.mxu0 0.0
    %1369 = vmatprep.subr.mxu0 0.0
    %1370 = vmatpush1.msra.mxu0 0.0
    %1371 = vmatprep.subr.mxu0 0.0
    %1372 = vmatpush1.msra.mxu0 0.0
    %1373 = vmatprep.subr.mxu0 0.0
    %1374 = vmatpush1.msra.mxu0 0.0
    %1375 = vmatprep.subr.mxu0 0.0
    %1376 = vmatpush1.msra.mxu0 0.0
    %1377 = vmatprep.subr.mxu0 0.0
    %1378 = vmatpush1.msra.mxu0 0.0
    %1379 = vmatprep.subr.mxu0 0.0
    %1380 = vmatpush1.msra.mxu0 0.0
    %1381 = vmatprep.subr.mxu0 0.0
    %1382 = vmatpush1.msra.mxu0 0.0
    %1383 = vmatprep.mubr.f32.mxu0 0.0
    %1384 = vmatmul.mubr.f32.gmra.mrb[0].mxu0 %v1317
    %v1385 = vpop.f32.mrb[0].mxu0
    %v1386 = vadd.f32 0.0, %v1385
    %v1387 = vpop.f32.mrb[0].mxu0
    %1388 = vdwg.mxu0
    %v1390 = vrot.slane %v1386, 4
    %v1392 = vadd.f32 %v1099, %v1390
    %v1393 = vxor.u32 %v1392, 2147483648
    %v1394 = vmul.f32 %v1393, 1.442695
    %v1395 = vpow.pop %v1394
    %v1396 = vadd.f32 %v1395, 1.0
    %v1397 = vrcp.pop %v1396
    %v1398 = vmul.f32 1.0, %v1397
    %v1399 = vtanh.pop %v1392
    %v1401 = vrot.slane %v1306, 6
    %v1403 = vmul.f32 %v1398, %v1401
    %1405 = vrot.lane.b32.xlu0 %v1399, 64
    %v1406 = vpop.permute.xlu0 %1405
    %v1408 = vmul.f32 %v1398, %v1406
    %1410 = vrot.lane.b32.xlu0 %v1408, 32
    %v1411 = vpop.permute.xlu0 %1410
    %v1413 = vadd.f32 %v1403, %v1411
    %v1414 = vtanh.pop %v1413
    %1416 = vrot.lane.b32.xlu0 %v1414, 64
    %v1417 = vpop.permute.xlu0 %1416
    %v1419 = vmul.f32 %v1398, %v1417
    %v1421 = vrot.slane %v1419, 4
    %1422 = vrot.lane.b32.xlu0 %v1421, 32
    %v1423 = vpop.permute.xlu0 %1422
    %v1424 = vsel %vm72, %v1423, 0
    %1426 = vmatprep.subr.mxu0 0.0
    %1427 = vmatpush1.msra.mxu0 %v1108
    %1428 = vmatprep.subr.mxu0 0.0
    %1429 = vmatpush1.msra.mxu0 %v1109
    %1430 = vmatprep.subr.mxu0 0.0
    %1431 = vmatpush1.msra.mxu0 %v1110
    %1432 = vmatprep.subr.mxu0 0.0
    %1433 = vmatpush1.msra.mxu0 %v1111
    %1434 = vmatprep.subr.mxu0 0.0
    %1435 = vmatpush1.msra.mxu0 0.0
    %1436 = vmatprep.subr.mxu0 0.0
    %1437 = vmatpush1.msra.mxu0 0.0
    %1438 = vmatprep.subr.mxu0 0.0
    %1439 = vmatpush1.msra.mxu0 0.0
    %1440 = vmatprep.subr.mxu0 0.0
    %1441 = vmatpush1.msra.mxu0 0.0
    %1442 = vmatprep.subr.mxu0 0.0
    %1443 = vmatpush1.msra.mxu0 0.0
    %1444 = vmatprep.subr.mxu0 0.0
    %1445 = vmatpush1.msra.mxu0 0.0
    %1446 = vmatprep.subr.mxu0 0.0
    %1447 = vmatpush1.msra.mxu0 0.0
    %1448 = vmatprep.subr.mxu0 0.0
    %1449 = vmatpush1.msra.mxu0 0.0
    %1450 = vmatprep.subr.mxu0 0.0
    %1451 = vmatpush1.msra.mxu0 0.0
    %1452 = vmatprep.subr.mxu0 0.0
    %1453 = vmatpush1.msra.mxu0 0.0
    %1454 = vmatprep.subr.mxu0 0.0
    %1455 = vmatpush1.msra.mxu0 0.0
    %1456 = vmatprep.subr.mxu0 0.0
    %1457 = vmatpush1.msra.mxu0 0.0
    %1458 = vmatprep.subr.mxu0 0.0
    %1459 = vmatpush1.msra.mxu0 0.0
    %1460 = vmatprep.subr.mxu0 0.0
    %1461 = vmatpush1.msra.mxu0 0.0
    %1462 = vmatprep.subr.mxu0 0.0
    %1463 = vmatpush1.msra.mxu0 0.0
    %1464 = vmatprep.subr.mxu0 0.0
    %1465 = vmatpush1.msra.mxu0 0.0
    %1466 = vmatprep.subr.mxu0 0.0
    %1467 = vmatpush1.msra.mxu0 0.0
    %1468 = vmatprep.subr.mxu0 0.0
    %1469 = vmatpush1.msra.mxu0 0.0
    %1470 = vmatprep.subr.mxu0 0.0
    %1471 = vmatpush1.msra.mxu0 0.0
    %1472 = vmatprep.subr.mxu0 0.0
    %1473 = vmatpush1.msra.mxu0 0.0
    %1474 = vmatprep.subr.mxu0 0.0
    %1475 = vmatpush1.msra.mxu0 0.0
    %1476 = vmatprep.subr.mxu0 0.0
    %1477 = vmatpush1.msra.mxu0 0.0
    %1478 = vmatprep.subr.mxu0 0.0
    %1479 = vmatpush1.msra.mxu0 0.0
    %1480 = vmatprep.subr.mxu0 0.0
    %1481 = vmatpush1.msra.mxu0 0.0
    %1482 = vmatprep.subr.mxu0 0.0
    %1483 = vmatpush1.msra.mxu0 0.0
    %1484 = vmatprep.subr.mxu0 0.0
    %1485 = vmatpush1.msra.mxu0 0.0
    %1486 = vmatprep.subr.mxu0 0.0
    %1487 = vmatpush1.msra.mxu0 0.0
    %1488 = vmatprep.subr.mxu0 0.0
    %1489 = vmatpush1.msra.mxu0 0.0
    %1490 = vmatprep.mubr.f32.mxu0 0.0
    %1491 = vmatmul.mubr.f32.gmra.mrb[0].mxu0 %v1424
    %v1492 = vpop.f32.mrb[0].mxu0
    %v1493 = vadd.f32 0.0, %v1492
    %v1494 = vpop.f32.mrb[0].mxu0
    %1495 = vdwg.mxu0
    %v1497 = vrot.slane %v1493, 2
    %v1499 = vadd.f32 %v1099, %v1497
    %v1500 = vxor.u32 %v1499, 2147483648
    %v1501 = vmul.f32 %v1500, 1.442695
    %v1502 = vpow.pop %v1501
    %v1503 = vadd.f32 %v1502, 1.0
    %v1504 = vrcp.pop %v1503
    %v1505 = vmul.f32 1.0, %v1504
    %v1506 = vtanh.pop %v1499
    %v1508 = vrot.slane %v1413, 6
    %v1510 = vmul.f32 %v1505, %v1508
    %1512 = vrot.lane.b32.xlu0 %v1506, 64
    %v1513 = vpop.permute.xlu0 %1512
    %v1515 = vmul.f32 %v1505, %v1513
    %1517 = vrot.lane.b32.xlu0 %v1515, 32
    %v1518 = vpop.permute.xlu0 %1517
    %v1520 = vadd.f32 %v1510, %v1518
    %v1521 = vtanh.pop %v1520
    %1523 = vrot.lane.b32.xlu0 %v1521, 64
    %v1524 = vpop.permute.xlu0 %1523
    %v1526 = vmul.f32 %v1505, %v1524
    %v1528 = vrot.slane %v1526, 6
    %1529 = vrot.lane.b32.xlu0 %v1528, 32
    %v1530 = vpop.permute.xlu0 %1529
    %v1531 = vsel %vm72, %v1530, 0
    %1533 = vmatprep.subr.mxu0 0.0
    %1534 = vmatpush1.msra.mxu0 %v1108
    %1535 = vmatprep.subr.mxu0 0.0
    %1536 = vmatpush1.msra.mxu0 %v1109
    %1537 = vmatprep.subr.mxu0 0.0
    %1538 = vmatpush1.msra.mxu0 %v1110
    %1539 = vmatprep.subr.mxu0 0.0
    %1540 = vmatpush1.msra.mxu0 %v1111
    %1541 = vmatprep.subr.mxu0 0.0
    %1542 = vmatpush1.msra.mxu0 0.0
    %1543 = vmatprep.subr.mxu0 0.0
    %1544 = vmatpush1.msra.mxu0 0.0
    %1545 = vmatprep.subr.mxu0 0.0
    %1546 = vmatpush1.msra.mxu0 0.0
    %1547 = vmatprep.subr.mxu0 0.0
    %1548 = vmatpush1.msra.mxu0 0.0
    %1549 = vmatprep.subr.mxu0 0.0
    %1550 = vmatpush1.msra.mxu0 0.0
    %1551 = vmatprep.subr.mxu0 0.0
    %1552 = vmatpush1.msra.mxu0 0.0
    %1553 = vmatprep.subr.mxu0 0.0
    %1554 = vmatpush1.msra.mxu0 0.0
    %1555 = vmatprep.subr.mxu0 0.0
    %1556 = vmatpush1.msra.mxu0 0.0
    %1557 = vmatprep.subr.mxu0 0.0
    %1558 = vmatpush1.msra.mxu0 0.0
    %1559 = vmatprep.subr.mxu0 0.0
    %1560 = vmatpush1.msra.mxu0 0.0
    %1561 = vmatprep.subr.mxu0 0.0
    %1562 = vmatpush1.msra.mxu0 0.0
    %1563 = vmatprep.subr.mxu0 0.0
    %1564 = vmatpush1.msra.mxu0 0.0
    %1565 = vmatprep.subr.mxu0 0.0
    %1566 = vmatpush1.msra.mxu0 0.0
    %1567 = vmatprep.subr.mxu0 0.0
    %1568 = vmatpush1.msra.mxu0 0.0
    %1569 = vmatprep.subr.mxu0 0.0
    %1570 = vmatpush1.msra.mxu0 0.0
    %1571 = vmatprep.subr.mxu0 0.0
    %1572 = vmatpush1.msra.mxu0 0.0
    %1573 = vmatprep.subr.mxu0 0.0
    %1574 = vmatpush1.msra.mxu0 0.0
    %1575 = vmatprep.subr.mxu0 0.0
    %1576 = vmatpush1.msra.mxu0 0.0
    %1577 = vmatprep.subr.mxu0 0.0
    %1578 = vmatpush1.msra.mxu0 0.0
    %1579 = vmatprep.subr.mxu0 0.0
    %1580 = vmatpush1.msra.mxu0 0.0
    %1581 = vmatprep.subr.mxu0 0.0
    %1582 = vmatpush1.msra.mxu0 0.0
    %1583 = vmatprep.subr.mxu0 0.0
    %1584 = vmatpush1.msra.mxu0 0.0
    %1585 = vmatprep.subr.mxu0 0.0
    %1586 = vmatpush1.msra.mxu0 0.0
    %1587 = vmatprep.subr.mxu0 0.0
    %1588 = vmatpush1.msra.mxu0 0.0
    %1589 = vmatprep.subr.mxu0 0.0
    %1590 = vmatpush1.msra.mxu0 0.0
    %1591 = vmatprep.subr.mxu0 0.0
    %1592 = vmatpush1.msra.mxu0 0.0
    %1593 = vmatprep.subr.mxu0 0.0
    %1594 = vmatpush1.msra.mxu0 0.0
    %1595 = vmatprep.subr.mxu0 0.0
    %1596 = vmatpush1.msra.mxu0 0.0
    %1597 = vmatprep.mubr.f32.mxu0 0.0
    %1598 = vmatmul.mubr.f32.gmra.mrb[0].mxu0 %v1531
    %v1599 = vpop.f32.mrb[0].mxu0
    %v1600 = vadd.f32 0.0, %v1599
    %v1601 = vpop.f32.mrb[0].mxu0
    %1602 = vdwg.mxu0
    %v1603 = vadd.f32 %v1104, %v1600
    %v1604 = vxor.u32 %v1603, 2147483648
    %v1605 = vmul.f32 %v1604, 1.442695
    %v1606 = vpow.pop %v1605
    %v1607 = vadd.f32 %v1606, 1.0
    %v1608 = vrcp.pop %v1607
    %v1609 = vmul.f32 1.0, %v1608
    %v1610 = vtanh.pop %v1603
    %v1612 = vrot.slane %v1520, 6
    %v1614 = vmul.f32 %v1609, %v1612
    %1616 = vrot.lane.b32.xlu0 %v1610, 64
    %v1617 = vpop.permute.xlu0 %1616
    %v1619 = vmul.f32 %v1609, %v1617
    %1621 = vrot.lane.b32.xlu0 %v1619, 32
    %v1622 = vpop.permute.xlu0 %1621
    %v1624 = vadd.f32 %v1614, %v1622
    %v1625 = vtanh.pop %v1624
    %1627 = vrot.lane.b32.xlu0 %v1625, 64
    %v1628 = vpop.permute.xlu0 %1627
    %v1630 = vmul.f32 %v1609, %v1628
    %1632 = vrot.lane.b32.xlu0 %v1630, 32
    %v1633 = vpop.permute.xlu0 %1632
    %v1634 = vsel %vm72, %v1633, 0
    %1636 = vmatprep.subr.mxu0 0.0
    %1637 = vmatpush1.msra.mxu0 %v1108
    %1638 = vmatprep.subr.mxu0 0.0
    %1639 = vmatpush1.msra.mxu0 %v1109
    %1640 = vmatprep.subr.mxu0 0.0
    %1641 = vmatpush1.msra.mxu0 %v1110
    %1642 = vmatprep.subr.mxu0 0.0
    %1643 = vmatpush1.msra.mxu0 %v1111
    %1644 = vmatprep.subr.mxu0 0.0
    %1645 = vmatpush1.msra.mxu0 0.0
    %1646 = vmatprep.subr.mxu0 0.0
    %1647 = vmatpush1.msra.mxu0 0.0
    %1648 = vmatprep.subr.mxu0 0.0
    %1649 = vmatpush1.msra.mxu0 0.0
    %1650 = vmatprep.subr.mxu0 0.0
    %1651 = vmatpush1.msra.mxu0 0.0
    %1652 = vmatprep.subr.mxu0 0.0
    %1653 = vmatpush1.msra.mxu0 0.0
    %1654 = vmatprep.subr.mxu0 0.0
    %1655 = vmatpush1.msra.mxu0 0.0
    %1656 = vmatprep.subr.mxu0 0.0
    %1657 = vmatpush1.msra.mxu0 0.0
    %1658 = vmatprep.subr.mxu0 0.0
    %1659 = vmatpush1.msra.mxu0 0.0
    %1660 = vmatprep.subr.mxu0 0.0
    %1661 = vmatpush1.msra.mxu0 0.0
    %1662 = vmatprep.subr.mxu0 0.0
    %1663 = vmatpush1.msra.mxu0 0.0
    %1664 = vmatprep.subr.mxu0 0.0
    %1665 = vmatpush1.msra.mxu0 0.0
    %1666 = vmatprep.subr.mxu0 0.0
    %1667 = vmatpush1.msra.mxu0 0.0
    %1668 = vmatprep.subr.mxu0 0.0
    %1669 = vmatpush1.msra.mxu0 0.0
    %1670 = vmatprep.subr.mxu0 0.0
    %1671 = vmatpush1.msra.mxu0 0.0
    %1672 = vmatprep.subr.mxu0 0.0
    %1673 = vmatpush1.msra.mxu0 0.0
    %1674 = vmatprep.subr.mxu0 0.0
    %1675 = vmatpush1.msra.mxu0 0.0
    %1676 = vmatprep.subr.mxu0 0.0
    %1677 = vmatpush1.msra.mxu0 0.0
    %1678 = vmatprep.subr.mxu0 0.0
    %1679 = vmatpush1.msra.mxu0 0.0
    %1680 = vmatprep.subr.mxu0 0.0
    %1681 = vmatpush1.msra.mxu0 0.0
    %1682 = vmatprep.subr.mxu0 0.0
    %1683 = vmatpush1.msra.mxu0 0.0
    %1684 = vmatprep.subr.mxu0 0.0
    %1685 = vmatpush1.msra.mxu0 0.0
    %1686 = vmatprep.subr.mxu0 0.0
    %1687 = vmatpush1.msra.mxu0 0.0
    %1688 = vmatprep.subr.mxu0 0.0
    %1689 = vmatpush1.msra.mxu0 0.0
    %1690 = vmatprep.subr.mxu0 0.0
    %1691 = vmatpush1.msra.mxu0 0.0
    %1692 = vmatprep.subr.mxu0 0.0
    %1693 = vmatpush1.msra.mxu0 0.0
    %1694 = vmatprep.subr.mxu0 0.0
    %1695 = vmatpush1.msra.mxu0 0.0
    %1696 = vmatprep.subr.mxu0 0.0
    %1697 = vmatpush1.msra.mxu0 0.0
    %1698 = vmatprep.subr.mxu0 0.0
    %1699 = vmatpush1.msra.mxu0 0.0
    %1700 = vmatprep.mubr.f32.mxu0 0.0
    %1701 = vmatmul.mubr.f32.gmra.mrb[0].mxu0 %v1634
    %v1702 = vpop.f32.mrb[0].mxu0
    %v1703 = vadd.f32 0.0, %v1702
    %v1704 = vpop.f32.mrb[0].mxu0
    %1705 = vdwg.mxu0
    %v1707 = vrot.slane %v1703, 6
    %v1709 = vadd.f32 %v1104, %v1707
    %v1710 = vxor.u32 %v1709, 2147483648
    %v1711 = vmul.f32 %v1710, 1.442695
    %v1712 = vpow.pop %v1711
    %v1713 = vadd.f32 %v1712, 1.0
    %v1714 = vrcp.pop %v1713
    %v1715 = vmul.f32 1.0, %v1714
    %v1716 = vtanh.pop %v1709
    %v1718 = vrot.slane %v1624, 6
    %v1720 = vmul.f32 %v1715, %v1718
    %1722 = vrot.lane.b32.xlu0 %v1716, 64
    %v1723 = vpop.permute.xlu0 %1722
    %v1725 = vmul.f32 %v1715, %v1723
    %1727 = vrot.lane.b32.xlu0 %v1725, 32
    %v1728 = vpop.permute.xlu0 %1727
    %v1730 = vadd.f32 %v1720, %v1728
    %v1731 = vtanh.pop %v1730
    %1733 = vrot.lane.b32.xlu0 %v1731, 64
    %v1734 = vpop.permute.xlu0 %1733
    %v1736 = vmul.f32 %v1715, %v1734
    %v1738 = vrot.slane %v1736, 2
    %1739 = vrot.lane.b32.xlu0 %v1738, 32
    %v1740 = vpop.permute.xlu0 %1739
    %v1741 = vsel %vm72, %v1740, 0
    %1743 = vmatprep.subr.mxu0 0.0
    %1744 = vmatpush1.msra.mxu0 %v1108
    %1745 = vmatprep.subr.mxu0 0.0
    %1746 = vmatpush1.msra.mxu0 %v1109
    %1747 = vmatprep.subr.mxu0 0.0
    %1748 = vmatpush1.msra.mxu0 %v1110
    %1749 = vmatprep.subr.mxu0 0.0
    %1750 = vmatpush1.msra.mxu0 %v1111
    %1751 = vmatprep.subr.mxu0 0.0
    %1752 = vmatpush1.msra.mxu0 0.0
    %1753 = vmatprep.subr.mxu0 0.0
    %1754 = vmatpush1.msra.mxu0 0.0
    %1755 = vmatprep.subr.mxu0 0.0
    %1756 = vmatpush1.msra.mxu0 0.0
    %1757 = vmatprep.subr.mxu0 0.0
    %1758 = vmatpush1.msra.mxu0 0.0
    %1759 = vmatprep.subr.mxu0 0.0
    %1760 = vmatpush1.msra.mxu0 0.0
    %1761 = vmatprep.subr.mxu0 0.0
    %1762 = vmatpush1.msra.mxu0 0.0
    %1763 = vmatprep.subr.mxu0 0.0
    %1764 = vmatpush1.msra.mxu0 0.0
    %1765 = vmatprep.subr.mxu0 0.0
    %1766 = vmatpush1.msra.mxu0 0.0
    %1767 = vmatprep.subr.mxu0 0.0
    %1768 = vmatpush1.msra.mxu0 0.0
    %1769 = vmatprep.subr.mxu0 0.0
    %1770 = vmatpush1.msra.mxu0 0.0
    %1771 = vmatprep.subr.mxu0 0.0
    %1772 = vmatpush1.msra.mxu0 0.0
    %1773 = vmatprep.subr.mxu0 0.0
    %1774 = vmatpush1.msra.mxu0 0.0
    %1775 = vmatprep.subr.mxu0 0.0
    %1776 = vmatpush1.msra.mxu0 0.0
    %1777 = vmatprep.subr.mxu0 0.0
    %1778 = vmatpush1.msra.mxu0 0.0
    %1779 = vmatprep.subr.mxu0 0.0
    %1780 = vmatpush1.msra.mxu0 0.0
    %1781 = vmatprep.subr.mxu0 0.0
    %1782 = vmatpush1.msra.mxu0 0.0
    %1783 = vmatprep.subr.mxu0 0.0
    %1784 = vmatpush1.msra.mxu0 0.0
    %1785 = vmatprep.subr.mxu0 0.0
    %1786 = vmatpush1.msra.mxu0 0.0
    %1787 = vmatprep.subr.mxu0 0.0
    %1788 = vmatpush1.msra.mxu0 0.0
    %1789 = vmatprep.subr.mxu0 0.0
    %1790 = vmatpush1.msra.mxu0 0.0
    %1791 = vmatprep.subr.mxu0 0.0
    %1792 = vmatpush1.msra.mxu0 0.0
    %1793 = vmatprep.subr.mxu0 0.0
    %1794 = vmatpush1.msra.mxu0 0.0
    %1795 = vmatprep.subr.mxu0 0.0
    %1796 = vmatpush1.msra.mxu0 0.0
    %1797 = vmatprep.subr.mxu0 0.0
    %1798 = vmatpush1.msra.mxu0 0.0
    %1799 = vmatprep.subr.mxu0 0.0
    %1800 = vmatpush1.msra.mxu0 0.0
    %1801 = vmatprep.subr.mxu0 0.0
    %1802 = vmatpush1.msra.mxu0 0.0
    %1803 = vmatprep.subr.mxu0 0.0
    %1804 = vmatpush1.msra.mxu0 0.0
    %1805 = vmatprep.subr.mxu0 0.0
    %1806 = vmatpush1.msra.mxu0 0.0
    %1807 = vmatprep.mubr.f32.mxu0 0.0
    %1808 = vmatmul.mubr.f32.gmra.mrb[0].mxu0 %v1741
    %v1809 = vpop.f32.mrb[0].mxu0
    %v1810 = vadd.f32 0.0, %v1809
    %v1811 = vpop.f32.mrb[0].mxu0
    %1812 = vdwg.mxu0
    %v1814 = vrot.slane %v1810, 4
    %v1816 = vadd.f32 %v1104, %v1814
    %v1817 = vxor.u32 %v1816, 2147483648
    %v1818 = vmul.f32 %v1817, 1.442695
    %v1819 = vpow.pop %v1818
    %v1820 = vadd.f32 %v1819, 1.0
    %v1821 = vrcp.pop %v1820
    %v1822 = vmul.f32 1.0, %v1821
    %v1823 = vtanh.pop %v1816
    %v1825 = vrot.slane %v1730, 6
    %v1827 = vmul.f32 %v1822, %v1825
    %1829 = vrot.lane.b32.xlu0 %v1823, 64
    %v1830 = vpop.permute.xlu0 %1829
    %v1832 = vmul.f32 %v1822, %v1830
    %1834 = vrot.lane.b32.xlu0 %v1832, 32
    %v1835 = vpop.permute.xlu0 %1834
    %v1837 = vadd.f32 %v1827, %v1835
    %v1838 = vtanh.pop %v1837
    %1840 = vrot.lane.b32.xlu0 %v1838, 64
    %v1841 = vpop.permute.xlu0 %1840
    %v1843 = vmul.f32 %v1822, %v1841
    %v1845 = vrot.slane %v1843, 4
    %1846 = vrot.lane.b32.xlu0 %v1845, 32
    %v1847 = vpop.permute.xlu0 %1846
    %v1848 = vsel %vm72, %v1847, 0
    %1850 = vmatprep.subr.mxu0 0.0
    %1851 = vmatpush1.msra.mxu0 %v1108
    %1852 = vmatprep.subr.mxu0 0.0
    %1853 = vmatpush1.msra.mxu0 %v1109
    %1854 = vmatprep.subr.mxu0 0.0
    %1855 = vmatpush1.msra.mxu0 %v1110
    %1856 = vmatprep.subr.mxu0 0.0
    %1857 = vmatpush1.msra.mxu0 %v1111
    %1858 = vmatprep.subr.mxu0 0.0
    %1859 = vmatpush1.msra.mxu0 0.0
    %1860 = vmatprep.subr.mxu0 0.0
    %1861 = vmatpush1.msra.mxu0 0.0
    %1862 = vmatprep.subr.mxu0 0.0
    %1863 = vmatpush1.msra.mxu0 0.0
    %1864 = vmatprep.subr.mxu0 0.0
    %1865 = vmatpush1.msra.mxu0 0.0
    %1866 = vmatprep.subr.mxu0 0.0
    %1867 = vmatpush1.msra.mxu0 0.0
    %1868 = vmatprep.subr.mxu0 0.0
    %1869 = vmatpush1.msra.mxu0 0.0
    %1870 = vmatprep.subr.mxu0 0.0
    %1871 = vmatpush1.msra.mxu0 0.0
    %1872 = vmatprep.subr.mxu0 0.0
    %1873 = vmatpush1.msra.mxu0 0.0
    %1874 = vmatprep.subr.mxu0 0.0
    %1875 = vmatpush1.msra.mxu0 0.0
    %1876 = vmatprep.subr.mxu0 0.0
    %1877 = vmatpush1.msra.mxu0 0.0
    %1878 = vmatprep.subr.mxu0 0.0
    %1879 = vmatpush1.msra.mxu0 0.0
    %1880 = vmatprep.subr.mxu0 0.0
    %1881 = vmatpush1.msra.mxu0 0.0
    %1882 = vmatprep.subr.mxu0 0.0
    %1883 = vmatpush1.msra.mxu0 0.0
    %1884 = vmatprep.subr.mxu0 0.0
    %1885 = vmatpush1.msra.mxu0 0.0
    %1886 = vmatprep.subr.mxu0 0.0
    %1887 = vmatpush1.msra.mxu0 0.0
    %1888 = vmatprep.subr.mxu0 0.0
    %1889 = vmatpush1.msra.mxu0 0.0
    %1890 = vmatprep.subr.mxu0 0.0
    %1891 = vmatpush1.msra.mxu0 0.0
    %1892 = vmatprep.subr.mxu0 0.0
    %1893 = vmatpush1.msra.mxu0 0.0
    %1894 = vmatprep.subr.mxu0 0.0
    %1895 = vmatpush1.msra.mxu0 0.0
    %1896 = vmatprep.subr.mxu0 0.0
    %1897 = vmatpush1.msra.mxu0 0.0
    %1898 = vmatprep.subr.mxu0 0.0
    %1899 = vmatpush1.msra.mxu0 0.0
    %1900 = vmatprep.subr.mxu0 0.0
    %1901 = vmatpush1.msra.mxu0 0.0
    %1902 = vmatprep.subr.mxu0 0.0
    %1903 = vmatpush1.msra.mxu0 0.0
    %1904 = vmatprep.subr.mxu0 0.0
    %1905 = vmatpush1.msra.mxu0 0.0
    %1906 = vmatprep.subr.mxu0 0.0
    %1907 = vmatpush1.msra.mxu0 0.0
    %1908 = vmatprep.subr.mxu0 0.0
    %1909 = vmatpush1.msra.mxu0 0.0
    %1910 = vmatprep.subr.mxu0 0.0
    %1911 = vmatpush1.msra.mxu0 0.0
    %1912 = vmatprep.subr.mxu0 0.0
    %1913 = vmatpush1.msra.mxu0 0.0
    %1914 = vmatprep.mubr.f32.mxu0 0.0
    %1915 = vmatmul.mubr.f32.gmra.mrb[0].mxu0 %v1848
    %v1916 = vpop.f32.mrb[0].mxu0
    %v1917 = vadd.f32 0.0, %v1916
    %v1918 = vpop.f32.mrb[0].mxu0
    %1919 = vdwg.mxu0
    %v1921 = vrot.slane %v1917, 2
    %v1923 = vadd.f32 %v1104, %v1921
    %v1924 = vxor.u32 %v1923, 2147483648
    %v1925 = vmul.f32 %v1924, 1.442695
    %v1926 = vpow.pop %v1925
    %v1927 = vadd.f32 %v1926, 1.0
    %v1928 = vrcp.pop %v1927
    %v1929 = vmul.f32 1.0, %v1928
    %v1930 = vtanh.pop %v1923
    %v1932 = vrot.slane %v1837, 6
    %v1934 = vmul.f32 %v1929, %v1932
    %1936 = vrot.lane.b32.xlu0 %v1930, 64
    %v1937 = vpop.permute.xlu0 %1936
    %v1939 = vmul.f32 %v1929, %v1937
    %1941 = vrot.lane.b32.xlu0 %v1939, 32
    %v1942 = vpop.permute.xlu0 %1941
    %v1944 = vadd.f32 %v1934, %v1942
    %v1945 = vtanh.pop %v1944
    %1947 = vrot.lane.b32.xlu0 %v1945, 64
    %v1948 = vpop.permute.xlu0 %1947
    %v1950 = vmul.f32 %v1929, %v1948
    %v1951 = vsel %vm1000, %v1206, %v1312
    %v1952 = vsel %vm1002, %v1951, %v1419
    %v1953 = vsel %vm1004, %v1952, %v1526
    %v1954 = vsel %vm1000, %v1630, %v1736
    %v1955 = vsel %vm1002, %v1954, %v1843
    %v1956 = vsel %vm1004, %v1955, %v1950
    %1959 = vrot.lane.b32.xlu0 %v1953, 32
    %v1960 = vpop.permute.xlu0 %1959
    %1961 = vrot.lane.b32.xlu0 %v1956, 32
    %v1962 = vpop.permute.xlu0 %1961
    %1965 = vst.msk [vmem:[#allocation8] sm:$0xff] %vm72, %v1960
    %1966 = vst.msk [vmem:[#allocation8 + $0x8] sm:$0xff] %vm72, %v1962
    // Predicated region
    $region30: #{tpu_custom_call.1} parent=1 // pred_check
      _
    $region31: #{tpu_custom_call.1} parent=1 // pred_check_branch
      %1968 = sbr.rel (0) target = $region33
    $region32: #{tpu_custom_call.1} parent=1 // pred_region
      %s1970 = ssub.s32 256, 256
      %1971 = vsyncadd [#allocation4], %s1970
      %s1972 = sshll.u32 [#allocation8], 4
      %s1973 = int_to_ptr.vmem [resolvable:$true] %s1972
      %1978 = dma.vmem_to_hbm [thread:$0]  %s1973, 256, %s4, [#allocation4], 128, 128, 8
    $region33: #{tpu_custom_call.1} parent=1 // pred_fallthru
      _
    // Predicated region
    $region34: #{tpu_custom_call.1} parent=1 // pred_check
      _
    $region35: #{tpu_custom_call.1} parent=1 // pred_check_branch
      %1980 = sbr.rel (0) target = $region37
    $region36: #{tpu_custom_call.1} parent=1 // pred_region
      %1981 = dma.done [#allocation4], 256
    $region37: #{tpu_custom_call.1} parent=1 // pred_fallthru
      _
    %1982 = vsyncpa [#allocation3], 1
    %1983 = vsyncpa [#allocation6], 1
    %1984 = vsyncpa [#allocation4], 1

</llo_original>
